<compile_context>
chip_gen: v5e
topology: v5e:2x2
jax: 0.10.0
libtpu: 0.0.40
codegen_flags: <defaults>
</compile_context>

<pallas_src>
import math
import functools
import numpy as np

import jax
import jax.numpy as jnp
from jax import lax
from jax.experimental import pallas as pl
from jax.experimental.pallas import tpu as pltpu


# ----------------------------- Pallas kernel -------------------------------

def _window_attention_kernel(x_ref, qkvw_ref, qkvb_ref, projw_ref, projb_ref,
                             bias_ref, *rest, num_heads, head_dim, windows,
                             has_mask, bf16_exp):
    """Fused W-MSA over a block of G = `windows` whole windows.

    Ref shapes (per grid step):
      x_ref:     (G*N, C)   bf16 tokens (G windows, rows flattened)
      qkvw_ref:  (C, 3C)    bf16, head-contiguous [h][q|k|v][hd] columns,
                            1/sqrt(hd) folded into the q columns
      qkvb_ref:  (1, 3C)    f32, same column order / scale
      projw_ref: (C, C)     bf16
      projb_ref: (1, C)     f32
      bias_ref:  (nH, N, N) bf16 relative-position bias
      mask_ref:  (G, N, N)  bf16 shift mask (present only when has_mask)
      o_ref:     (G*N, C)
      ctx_ref:   (G*N, C)   f32 VMEM scratch (per-head context, head-major cols)
    """
    if has_mask:
        mask_ref, o_ref, ctx_ref = rest
    else:
        o_ref, ctx_ref = rest

    M, C = x_ref.shape
    G = windows
    N = M // G
    hd = head_dim

    # Fused QKV projection over all G windows at once: one (M,C)x(C,3C) MXU
    # matmul per step, bf16 operands, f32 accumulation, single cast to bf16.
    qkv = jnp.dot(x_ref[...], qkvw_ref[...], preferred_element_type=jnp.float32)
    qkv = (qkv + qkvb_ref[...]).astype(jnp.bfloat16)            # (M, 3C) bf16

    if has_mask:
        mask = mask_ref[...].astype(jnp.float32)                # (G, N, N) f32

    for h in range(num_heads):                                  # static unroll
        base = 3 * hd * h                                       # contiguous q|k|v
        q = qkv[:, base:base + hd].reshape(G, N, hd)
        k = qkv[:, base + hd:base + 2 * hd].reshape(G, N, hd)
        v = qkv[:, base + 2 * hd:base + 3 * hd].reshape(G, N, hd)

        # (G, N, N) logits; q already carries the 1/sqrt(hd) scale.
        attn = lax.dot_general(q, k, (((2,), (2,)), ((0,), (0,))),
                               preferred_element_type=jnp.float32)
        attn = attn + bias_ref[h].astype(jnp.float32)
        if has_mask:
            attn = attn + mask

        # Numerically-stable softmax; normalization deferred to the context.
        attn = attn - jnp.max(attn, axis=-1, keepdims=True)
        if bf16_exp:
            # v6e/v7x: bf16-capable EUP; exp in bf16, row-sum accumulated in f32.
            p = jnp.exp(attn.astype(jnp.bfloat16))
            denom = jnp.sum(p.astype(jnp.float32), axis=-1, keepdims=True)
        else:
            # v5e and older: VPU/EUP are f32-only, keep elementwise math in f32.
            p32 = jnp.exp(attn)
            denom = jnp.sum(p32, axis=-1, keepdims=True)
            p = p32.astype(jnp.bfloat16)
        inv = pl.reciprocal(denom, approx=True)                 # (G, N, 1) f32 (EUP)

        ctx = lax.dot_general(p, v, (((2,), (1,)), ((0,), (0,))),
                              preferred_element_type=jnp.float32)   # (G, N, hd)
        # Write this head's context into its lane slice of the VMEM scratch
        # (bounds live ranges; replaces the list + jnp.concatenate relayout).
        ctx_ref[:, h * hd:(h + 1) * hd] = (ctx * inv).reshape(M, hd)

    # Output projection: one (M,C)x(C,C) MXU matmul per step.
    out = jnp.dot(ctx_ref[...].astype(jnp.bfloat16), projw_ref[...],
                  preferred_element_type=jnp.float32) + projb_ref[...]
    o_ref[...] = out.astype(o_ref.dtype)


# ----------------------------- wrapper helpers ------------------------------

def _vmem_capacity_bytes():
    try:
        return int(pltpu.get_tpu_info().vmem_capacity_bytes)
    except Exception:
        return 64 << 20            # conservative v7x per-core floor


def _bf16_exp_supported():
    """bf16 exp only where the EUP is bf16-capable (v6e / v7x)."""
    try:
        kind = jax.devices()[0].device_kind.lower()
    except Exception:
        return False
    return any(s in kind for s in ("v6", "v7", "7x"))


def _vmem_step_estimate(G, N, C, num_heads, has_mask, out_itemsize):
    """Rough per-step VMEM footprint (double-buffered blocks + live values)."""
    M = G * N
    b = 2 * M * C * 2                        # x block (bf16, 2 buffers)
    b += 2 * M * C * out_itemsize            # out block (2 buffers)
    if has_mask:
        b += 2 * G * N * N * 2               # mask block (bf16, 2 buffers)
    b += 2 * (C * 3 * C * 2 + 3 * C * 4 + C * C * 2 + C * 4
              + num_heads * N * N * 2)       # resident params (counted 2x)
    b += M * C * 4                           # ctx scratch (f32)
    b += M * 3 * C * 2                       # live qkv intermediate (bf16)
    b += 3 * G * N * N * 4                   # live per-head logits/probs (f32)
    return b


def _pick_windows_per_step(B_, N, C, num_heads, nW, has_mask, out_itemsize,
                           vmem_budget, target_rows=256):
    """Pick G: fill MXU rows (>= target_rows) while keeping the pipeline fed."""
    cands = [g for g in range(1, B_ + 1)
             if B_ % g == 0
             and (not has_mask or nW % g == 0)
             and _vmem_step_estimate(g, N, C, num_heads, has_mask,
                                     out_itemsize) <= vmem_budget]
    if not cands:
        return 1
    for min_steps in (4, 2, 1):
        ok = [g for g in cands if B_ // g >= min_steps]
        if not ok:
            continue
        reach = [g for g in ok if g * N >= target_rows]
        # Smallest G that reaches the MXU-row target, else the largest G that
        # still leaves `min_steps` grid steps in flight.
        return min(reach) if reach else max(ok)
    return 1


# ----------------------------- wrapper --------------------------------------

def window_attention_forward(x, params, rel_index, mask=None, *,
                             num_heads, windows_per_step=None):
    """Swin WindowAttention.forward.

    x:    (num_windows*B, N, C);  mask: (nW, N, N) additive 0/-100 mask or None.
    """
    B_, N, C = x.shape
    assert C % num_heads == 0
    head_dim = C // num_heads
    scale = head_dim ** (-0.5)
    out_dtype = x.dtype

    has_mask = mask is not None
    nW = mask.shape[0] if has_mask else B_

    vmem_cap = _vmem_capacity_bytes()
    vmem_limit = int(min(vmem_cap * 3 // 4, 96 << 20))
    if windows_per_step is None:
        windows_per_step = _pick_windows_per_step(
            B_, N, C, num_heads, nW, has_mask,
            np.dtype(out_dtype).itemsize, vmem_limit // 2)
    G = windows_per_step
    assert B_ % G == 0, "windows_per_step must divide num_windows*B"
    num_steps = B_ // G
    M = G * N

    # --- one-time parameter prep (constant-folded under jit) -----------------
    # (a) fold 1/sqrt(head_dim) into the q columns / bias,
    # (b) permute qkv columns to head-contiguous [h][q|k|v][hd] order,
    # (c) store matmul weights as bf16 (f32 accumulation in-kernel).
    col_scale = np.concatenate([np.full((C,), scale, np.float32),
                                np.ones((2 * C,), np.float32)])
    perm = np.arange(3 * C).reshape(3, num_heads, head_dim)
    perm = perm.transpose(1, 0, 2).reshape(-1)
    qkv_w = params["qkv_w"].astype(jnp.float32) * col_scale[None, :]
    qkv_w = qkv_w[:, perm].astype(jnp.bfloat16)
    qkv_b = (params["qkv_b"].astype(jnp.float32) * col_scale)[perm].reshape(1, 3 * C)
    proj_w = params["proj_w"].astype(jnp.bfloat16)
    proj_b = params["proj_b"].astype(jnp.float32).reshape(1, C)

    # Relative-position bias gather -> (nH, N, N), done once outside the kernel.
    rel_bias = params["rel_table"][rel_index.reshape(-1)]
    rel_bias = rel_bias.reshape(N, N, num_heads).transpose(2, 0, 1)
    rel_bias = rel_bias.astype(jnp.bfloat16)

    # bf16 DMA for the only per-step HBM streams (x / mask).
    x2 = x.reshape(B_ * N, C).astype(jnp.bfloat16)

    in_specs = [
        pl.BlockSpec((M, C), lambda i: (i, 0)),                 # x rows (G windows)
        pl.BlockSpec((C, 3 * C), lambda i: (0, 0)),             # qkv_w (resident)
        pl.BlockSpec((1, 3 * C), lambda i: (0, 0)),             # qkv_b
        pl.BlockSpec((C, C), lambda i: (0, 0)),                 # proj_w (resident)
        pl.BlockSpec((1, C), lambda i: (0, 0)),                 # proj_b
        pl.BlockSpec((num_heads, N, N), lambda i: (0, 0, 0)),   # rel. pos. bias
    ]
    args = [x2, qkv_w, qkv_b, proj_w, proj_b, rel_bias]

    if has_mask:
        assert nW % G == 0 and B_ % nW == 0
        bpi = nW // G
        if bpi == 1:
            mask_index_map = lambda i: (0, 0, 0)
        else:
            mask_index_map = lambda i, bpi=bpi: (i % bpi, 0, 0)
        # (nW, N, N) mask indexed per step; never tiled to (B*nW, ...) and no
        # all-zeros mask is materialized on the unshifted path.
        in_specs.append(pl.BlockSpec((G, N, N), mask_index_map))
        args.append(mask.astype(jnp.bfloat16))

    kernel = functools.partial(
        _window_attention_kernel, num_heads=num_heads, head_dim=head_dim,
        windows=G, has_mask=has_mask, bf16_exp=_bf16_exp_supported())

    out = pl.pallas_call(
        kernel,
        out_shape=jax.ShapeDtypeStruct((B_ * N, C), out_dtype),
        grid=(num_steps,),
        in_specs=in_specs,
        out_specs=pl.BlockSpec((M, C), lambda i: (i, 0)),
        scratch_shapes=[pltpu.VMEM((M, C), jnp.float32)],
        compiler_params=pltpu.CompilerParams(
            dimension_semantics=("parallel",),
            vmem_limit_bytes=vmem_limit),
    )(*args)
    return out.reshape(B_, N, C)


# ----------------------------- helpers / reference --------------------------

def relative_position_index(ws):
    coords = np.stack(np.meshgrid(np.arange(ws), np.arange(ws), indexing="ij"))
    coords_flatten = coords.reshape(2, -1)
    rel = coords_flatten[:, :, None] - coords_flatten[:, None, :]
    rel = rel.transpose(1, 2, 0).copy()
    rel[:, :, 0] += ws - 1
    rel[:, :, 1] += ws - 1
    rel[:, :, 0] *= 2 * ws - 1
    return rel.sum(-1)                                             # (ws*ws, ws*ws)


def build_shift_mask(H, W, ws, shift):
    """Swin's BasicLayer img_mask -> attn_mask construction (for testing)."""
    Hp = int(math.ceil(H / ws)) * ws
    Wp = int(math.ceil(W / ws)) * ws
    img_mask = np.zeros((1, Hp, Wp, 1), np.float32)
    slices = (slice(0, -ws), slice(-ws, -shift), slice(-shift, None))
    cnt = 0
    for hs in slices:
        for ws_ in slices:
            img_mask[:, hs, ws_, :] = cnt
            cnt += 1
    mw = img_mask.reshape(1, Hp // ws, ws, Wp // ws, ws, 1)
    mw = mw.transpose(0, 1, 3, 2, 4, 5).reshape(-1, ws * ws)
    am = mw[:, None, :] - mw[:, :, None]
    am = np.where(am != 0, -100.0, 0.0).astype(np.float32)
    return jnp.asarray(am)                                         # (nW, ws*ws, ws*ws)


def init_params(key, C, num_heads, ws):
    n_rel = (2 * ws - 1) * (2 * ws - 1)
    ks = jax.random.split(key, 5)
    return {
        "qkv_w": 0.02 * jax.random.normal(ks[0], (C, 3 * C), jnp.float32),
        "qkv_b": 0.02 * jax.random.normal(ks[1], (3 * C,), jnp.float32),
        "proj_w": 0.02 * jax.random.normal(ks[2], (C, C), jnp.float32),
        "proj_b": 0.02 * jax.random.normal(ks[3], (C,), jnp.float32),
        "rel_table": 0.02 * jax.random.normal(ks[4], (n_rel, num_heads), jnp.float32),
    }


def window_attention_reference(x, params, rel_index, mask, *, num_heads):
    """Pure-JAX mirror of the PyTorch WindowAttention.forward (f32)."""
    B_, N, C = x.shape
    head_dim = C // num_heads
    scale = head_dim ** (-0.5)
    qkv = x @ params["qkv_w"] + params["qkv_b"]
    qkv = qkv.reshape(B_, N, 3, num_heads, head_dim).transpose(2, 0, 3, 1, 4)
    q, k, v = qkv[0] * scale, qkv[1], qkv[2]
    attn = jnp.einsum("bhnd,bhmd->bhnm", q, k)
    rel_bias = params["rel_table"][rel_index.reshape(-1)]
    rel_bias = rel_bias.reshape(N, N, num_heads).transpose(2, 0, 1)
    attn = attn + rel_bias[None]
    if mask is not None:
        nW = mask.shape[0]
        attn = attn.reshape(B_ // nW, nW, num_heads, N, N) + mask[None, :, None]
        attn = attn.reshape(B_, num_heads, N, N)
    attn = jax.nn.softmax(attn, axis=-1)
    out = jnp.einsum("bhnm,bhmd->bhnd", attn, v)
    out = out.transpose(0, 2, 1, 3).reshape(B_, N, C)
    return out @ params["proj_w"] + params["proj_b"]


# ----------------------------- main ------------------------------------------

if __name__ == "__main__":
    # Small config consistent with Swin W-MSA usage.
    B = 2
    H = W = 8
    C = 32
    num_heads = 4
    window_size = 4
    shift_size = 2

    N = window_size * window_size                      # tokens per window = 16
    nW = (H // window_size) * (W // window_size)       # windows per image = 4
    B_ = B * nW                                        # total windows     = 8

    key = jax.random.PRNGKey(0)
    kx, kp = jax.random.split(key)
    x = jax.random.normal(kx, (B_, N, C), jnp.float32)
    params = init_params(kp, C, num_heads, window_size)
    rel_index = jnp.asarray(relative_position_index(window_size), jnp.int32)
    mask = build_shift_mask(H, W, window_size, shift_size)        # (nW, N, N)

    fwd = jax.jit(functools.partial(window_attention_forward, num_heads=num_heads))

    # Shifted-window path (with mask) and plain path (mask=None).
    out_masked = jax.block_until_ready(fwd(x, params, rel_index, mask))
    out_plain = jax.block_until_ready(fwd(x, params, rel_index, None))

    ref_masked = window_attention_reference(x, params, rel_index, mask,
                                            num_heads=num_heads)
    ref_plain = window_attention_reference(x, params, rel_index, None,
                                           num_heads=num_heads)

    for out, ref in ((out_masked, ref_masked), (out_plain, ref_plain)):
        assert out.shape == (B_, N, C), out.shape
        assert bool(jnp.all(jnp.isfinite(out)))
        err = float(jnp.max(jnp.abs(out - ref)))
        tol = 5e-3 + 3e-2 * float(jnp.max(jnp.abs(ref)))   # bf16-matmul tolerance
        assert err < tol, (err, tol)

    print("KERNEL_OK")
</pallas_src>

<mosaic_0001>
module attributes {stable_mosaic.version = 11 : i64} {
  func.func @_window_attention_kernel(%arg0: i32, %arg1: memref<32x32xbf16, #tpu.memory_space<vmem>>, %arg2: memref<32x96xbf16, #tpu.memory_space<vmem>>, %arg3: memref<1x96xf32, #tpu.memory_space<vmem>>, %arg4: memref<32x32xbf16, #tpu.memory_space<vmem>>, %arg5: memref<1x32xf32, #tpu.memory_space<vmem>>, %arg6: memref<4x16x16xbf16, #tpu.memory_space<vmem>>, %arg7: memref<2x16x16xbf16, #tpu.memory_space<vmem>>, %arg8: memref<32x32xf32, #tpu.memory_space<vmem>>, %arg9: memref<32x32xf32, #tpu.memory_space<vmem>>) attributes {dimension_semantics = [#tpu.dimension_semantics<parallel>], iteration_bounds = array<i64: 4>, scalar_prefetch = 0 : i64, scratch_operands = 1 : i64, tpu.core_type = #tpu.core_type<tc>, window_params = [{transform_indices = @transform_0, window_bounds = array<i64: 32, 32>}, {pipeline_mode = #tpu.pipeline_mode<synchronous>, transform_indices = @transform_1, window_bounds = array<i64: 32, 96>}, {pipeline_mode = #tpu.pipeline_mode<synchronous>, transform_indices = @transform_2, window_bounds = array<i64: 1, 96>}, {pipeline_mode = #tpu.pipeline_mode<synchronous>, transform_indices = @transform_3, window_bounds = array<i64: 32, 32>}, {pipeline_mode = #tpu.pipeline_mode<synchronous>, transform_indices = @transform_4, window_bounds = array<i64: 1, 32>}, {pipeline_mode = #tpu.pipeline_mode<synchronous>, transform_indices = @transform_5, window_bounds = array<i64: 4, 16, 16>}, {transform_indices = @transform_6, window_bounds = array<i64: 2, 16, 16>}, {transform_indices = @transform_7, window_bounds = array<i64: 32, 32>}]} {
    %c0 = arith.constant 0 : index
    %c0_0 = arith.constant 0 : index
    %0 = vector.load %arg1[%c0, %c0_0] : memref<32x32xbf16, #tpu.memory_space<vmem>>, vector<32x32xbf16>
    %c0_1 = arith.constant 0 : index
    %c0_2 = arith.constant 0 : index
    %1 = vector.load %arg2[%c0_1, %c0_2] : memref<32x96xbf16, #tpu.memory_space<vmem>>, vector<32x96xbf16>
    %cst = arith.constant dense<0.000000e+00> : vector<32x96xf32>
    %2 = tpu.matmul %0, %1, %cst {dimension_numbers = #tpu.dot_dimension_numbers<[1], [0], [0], [1], [0, 0, 1, 1], [], []>} : vector<32x32xbf16>, vector<32x96xbf16>, vector<32x96xf32> -> vector<32x96xf32>
    %c0_3 = arith.constant 0 : index
    %c0_4 = arith.constant 0 : index
    %3 = vector.load %arg3[%c0_3, %c0_4] : memref<1x96xf32, #tpu.memory_space<vmem>>, vector<1x96xf32>
    %4 = vector.broadcast %3 : vector<1x96xf32> to vector<32x96xf32>
    %5 = arith.addf %2, %4 : vector<32x96xf32>
    %6 = arith.truncf %5 : vector<32x96xf32> to vector<32x96xbf16>
    %c0_5 = arith.constant 0 : index
    %c0_6 = arith.constant 0 : index
    %c0_7 = arith.constant 0 : index
    %7 = vector.load %arg7[%c0_5, %c0_6, %c0_7] : memref<2x16x16xbf16, #tpu.memory_space<vmem>>, vector<2x16x16xbf16>
    %8 = arith.extf %7 : vector<2x16x16xbf16> to vector<2x16x16xf32>
    %9 = vector.extract_strided_slice %6 {offsets = [0, 0], sizes = [32, 8], strides = [1, 1]} : vector<32x96xbf16> to vector<32x8xbf16>
    %10 = vector.shape_cast %9 : vector<32x8xbf16> to vector<2x16x8xbf16>
    %11 = vector.extract_strided_slice %6 {offsets = [0, 8], sizes = [32, 8], strides = [1, 1]} : vector<32x96xbf16> to vector<32x8xbf16>
    %12 = vector.shape_cast %11 : vector<32x8xbf16> to vector<2x16x8xbf16>
    %13 = vector.extract_strided_slice %6 {offsets = [0, 16], sizes = [32, 8], strides = [1, 1]} : vector<32x96xbf16> to vector<32x8xbf16>
    %14 = vector.shape_cast %13 : vector<32x8xbf16> to vector<2x16x8xbf16>
    %cst_8 = arith.constant dense<0.000000e+00> : vector<2x16x16xf32>
    %15 = tpu.matmul %10, %12, %cst_8 {dimension_numbers = #tpu.dot_dimension_numbers<[2], [2], [1], [1], [0, 0, 0, 1, 1, 1], [0], [0]>} : vector<2x16x8xbf16>, vector<2x16x8xbf16>, vector<2x16x16xf32> -> vector<2x16x16xf32>
    %c0_9 = arith.constant 0 : index
    %c0_10 = arith.constant 0 : index
    %c0_11 = arith.constant 0 : index
    %16 = vector.load %arg6[%c0_9, %c0_10, %c0_11] : memref<4x16x16xbf16, #tpu.memory_space<vmem>>, vector<1x16x16xbf16>
    %17 = vector.shape_cast %16 : vector<1x16x16xbf16> to vector<16x16xbf16>
    %18 = arith.extf %17 : vector<16x16xbf16> to vector<16x16xf32>
    %19 = vector.shape_cast %18 : vector<16x16xf32> to vector<1x16x16xf32>
    %20 = vector.broadcast %19 : vector<1x16x16xf32> to vector<2x16x16xf32>
    %21 = arith.addf %15, %20 : vector<2x16x16xf32>
    %22 = arith.addf %21, %8 : vector<2x16x16xf32>
    %cst_12 = arith.constant dense<0xFF800000> : vector<2x16xf32>
    %23 = vector.multi_reduction <maximumf>, %22, %cst_12 [2] : vector<2x16x16xf32> to vector<2x16xf32>
    %24 = vector.shape_cast %23 : vector<2x16xf32> to vector<2x16x1xf32>
    %25 = vector.broadcast %24 : vector<2x16x1xf32> to vector<2x16x16xf32>
    %26 = arith.subf %22, %25 : vector<2x16x16xf32>
    %27 = math.exp %26 : vector<2x16x16xf32>
    %cst_13 = arith.constant dense<0.000000e+00> : vector<2x16xf32>
    %28 = vector.multi_reduction <add>, %27, %cst_13 [2] : vector<2x16x16xf32> to vector<2x16xf32>
    %29 = vector.shape_cast %28 : vector<2x16xf32> to vector<2x16x1xf32>
    %30 = arith.truncf %27 : vector<2x16x16xf32> to vector<2x16x16xbf16>
    %31 = tpu.reciprocal %29 {approx = true} : vector<2x16x1xf32> -> vector<2x16x1xf32>
    %cst_14 = arith.constant dense<0.000000e+00> : vector<2x16x8xf32>
    %32 = tpu.matmul %30, %14, %cst_14 {dimension_numbers = #tpu.dot_dimension_numbers<[2], [1], [1], [2], [0, 0, 0, 1, 1, 2], [0], [0]>} : vector<2x16x16xbf16>, vector<2x16x8xbf16>, vector<2x16x8xf32> -> vector<2x16x8xf32>
    %33 = vector.broadcast %31 : vector<2x16x1xf32> to vector<2x16x8xf32>
    %34 = arith.mulf %32, %33 : vector<2x16x8xf32>
    %35 = vector.shape_cast %34 : vector<2x16x8xf32> to vector<32x8xf32>
    %c0_15 = arith.constant 0 : index
    %c0_16 = arith.constant 0 : index
    %36 = vector.load %arg9[%c0_15, %c0_16] : memref<32x32xf32, #tpu.memory_space<vmem>>, vector<32x8xf32>
    tpu.vector_store %arg9[%c0_15, %c0_16], %35 {strides = array<i32>} : memref<32x32xf32, #tpu.memory_space<vmem>>, vector<32x8xf32>,
    %37 = vector.extract_strided_slice %6 {offsets = [0, 24], sizes = [32, 8], strides = [1, 1]} : vector<32x96xbf16> to vector<32x8xbf16>
    %38 = vector.shape_cast %37 : vector<32x8xbf16> to vector<2x16x8xbf16>
    %39 = vector.extract_strided_slice %6 {offsets = [0, 32], sizes = [32, 8], strides = [1, 1]} : vector<32x96xbf16> to vector<32x8xbf16>
    %40 = vector.shape_cast %39 : vector<32x8xbf16> to vector<2x16x8xbf16>
    %41 = vector.extract_strided_slice %6 {offsets = [0, 40], sizes = [32, 8], strides = [1, 1]} : vector<32x96xbf16> to vector<32x8xbf16>
    %42 = vector.shape_cast %41 : vector<32x8xbf16> to vector<2x16x8xbf16>
    %cst_17 = arith.constant dense<0.000000e+00> : vector<2x16x16xf32>
    %43 = tpu.matmul %38, %40, %cst_17 {dimension_numbers = #tpu.dot_dimension_numbers<[2], [2], [1], [1], [0, 0, 0, 1, 1, 1], [0], [0]>} : vector<2x16x8xbf16>, vector<2x16x8xbf16>, vector<2x16x16xf32> -> vector<2x16x16xf32>
    %c1 = arith.constant 1 : index
    %c0_18 = arith.constant 0 : index
    %c0_19 = arith.constant 0 : index
    %44 = vector.load %arg6[%c1, %c0_18, %c0_19] : memref<4x16x16xbf16, #tpu.memory_space<vmem>>, vector<1x16x16xbf16>
    %45 = vector.shape_cast %44 : vector<1x16x16xbf16> to vector<16x16xbf16>
    %46 = arith.extf %45 : vector<16x16xbf16> to vector<16x16xf32>
    %47 = vector.shape_cast %46 : vector<16x16xf32> to vector<1x16x16xf32>
    %48 = vector.broadcast %47 : vector<1x16x16xf32> to vector<2x16x16xf32>
    %49 = arith.addf %43, %48 : vector<2x16x16xf32>
    %50 = arith.addf %49, %8 : vector<2x16x16xf32>
    %cst_20 = arith.constant dense<0xFF800000> : vector<2x16xf32>
    %51 = vector.multi_reduction <maximumf>, %50, %cst_20 [2] : vector<2x16x16xf32> to vector<2x16xf32>
    %52 = vector.shape_cast %51 : vector<2x16xf32> to vector<2x16x1xf32>
    %53 = vector.broadcast %52 : vector<2x16x1xf32> to vector<2x16x16xf32>
    %54 = arith.subf %50, %53 : vector<2x16x16xf32>
    %55 = math.exp %54 : vector<2x16x16xf32>
    %cst_21 = arith.constant dense<0.000000e+00> : vector<2x16xf32>
    %56 = vector.multi_reduction <add>, %55, %cst_21 [2] : vector<2x16x16xf32> to vector<2x16xf32>
    %57 = vector.shape_cast %56 : vector<2x16xf32> to vector<2x16x1xf32>
    %58 = arith.truncf %55 : vector<2x16x16xf32> to vector<2x16x16xbf16>
    %59 = tpu.reciprocal %57 {approx = true} : vector<2x16x1xf32> -> vector<2x16x1xf32>
    %cst_22 = arith.constant dense<0.000000e+00> : vector<2x16x8xf32>
    %60 = tpu.matmul %58, %42, %cst_22 {dimension_numbers = #tpu.dot_dimension_numbers<[2], [1], [1], [2], [0, 0, 0, 1, 1, 2], [0], [0]>} : vector<2x16x16xbf16>, vector<2x16x8xbf16>, vector<2x16x8xf32> -> vector<2x16x8xf32>
    %61 = vector.broadcast %59 : vector<2x16x1xf32> to vector<2x16x8xf32>
    %62 = arith.mulf %60, %61 : vector<2x16x8xf32>
    %63 = vector.shape_cast %62 : vector<2x16x8xf32> to vector<32x8xf32>
    %c0_23 = arith.constant 0 : index
    %c8 = arith.constant 8 : index
    %64 = vector.load %arg9[%c0_23, %c8] : memref<32x32xf32, #tpu.memory_space<vmem>>, vector<32x8xf32>
    tpu.vector_store %arg9[%c0_23, %c8], %63 {strides = array<i32>} : memref<32x32xf32, #tpu.memory_space<vmem>>, vector<32x8xf32>,
    %65 = vector.extract_strided_slice %6 {offsets = [0, 48], sizes = [32, 8], strides = [1, 1]} : vector<32x96xbf16> to vector<32x8xbf16>
    %66 = vector.shape_cast %65 : vector<32x8xbf16> to vector<2x16x8xbf16>
    %67 = vector.extract_strided_slice %6 {offsets = [0, 56], sizes = [32, 8], strides = [1, 1]} : vector<32x96xbf16> to vector<32x8xbf16>
    %68 = vector.shape_cast %67 : vector<32x8xbf16> to vector<2x16x8xbf16>
    %69 = vector.extract_strided_slice %6 {offsets = [0, 64], sizes = [32, 8], strides = [1, 1]} : vector<32x96xbf16> to vector<32x8xbf16>
    %70 = vector.shape_cast %69 : vector<32x8xbf16> to vector<2x16x8xbf16>
    %cst_24 = arith.constant dense<0.000000e+00> : vector<2x16x16xf32>
    %71 = tpu.matmul %66, %68, %cst_24 {dimension_numbers = #tpu.dot_dimension_numbers<[2], [2], [1], [1], [0, 0, 0, 1, 1, 1], [0], [0]>} : vector<2x16x8xbf16>, vector<2x16x8xbf16>, vector<2x16x16xf32> -> vector<2x16x16xf32>
    %c2 = arith.constant 2 : index
    %c0_25 = arith.constant 0 : index
    %c0_26 = arith.constant 0 : index
    %72 = vector.load %arg6[%c2, %c0_25, %c0_26] : memref<4x16x16xbf16, #tpu.memory_space<vmem>>, vector<1x16x16xbf16>
    %73 = vector.shape_cast %72 : vector<1x16x16xbf16> to vector<16x16xbf16>
    %74 = arith.extf %73 : vector<16x16xbf16> to vector<16x16xf32>
    %75 = vector.shape_cast %74 : vector<16x16xf32> to vector<1x16x16xf32>
    %76 = vector.broadcast %75 : vector<1x16x16xf32> to vector<2x16x16xf32>
    %77 = arith.addf %71, %76 : vector<2x16x16xf32>
    %78 = arith.addf %77, %8 : vector<2x16x16xf32>
    %cst_27 = arith.constant dense<0xFF800000> : vector<2x16xf32>
    %79 = vector.multi_reduction <maximumf>, %78, %cst_27 [2] : vector<2x16x16xf32> to vector<2x16xf32>
    %80 = vector.shape_cast %79 : vector<2x16xf32> to vector<2x16x1xf32>
    %81 = vector.broadcast %80 : vector<2x16x1xf32> to vector<2x16x16xf32>
    %82 = arith.subf %78, %81 : vector<2x16x16xf32>
    %83 = math.exp %82 : vector<2x16x16xf32>
    %cst_28 = arith.constant dense<0.000000e+00> : vector<2x16xf32>
    %84 = vector.multi_reduction <add>, %83, %cst_28 [2] : vector<2x16x16xf32> to vector<2x16xf32>
    %85 = vector.shape_cast %84 : vector<2x16xf32> to vector<2x16x1xf32>
    %86 = arith.truncf %83 : vector<2x16x16xf32> to vector<2x16x16xbf16>
    %87 = tpu.reciprocal %85 {approx = true} : vector<2x16x1xf32> -> vector<2x16x1xf32>
    %cst_29 = arith.constant dense<0.000000e+00> : vector<2x16x8xf32>
    %88 = tpu.matmul %86, %70, %cst_29 {dimension_numbers = #tpu.dot_dimension_numbers<[2], [1], [1], [2], [0, 0, 0, 1, 1, 2], [0], [0]>} : vector<2x16x16xbf16>, vector<2x16x8xbf16>, vector<2x16x8xf32> -> vector<2x16x8xf32>
    %89 = vector.broadcast %87 : vector<2x16x1xf32> to vector<2x16x8xf32>
    %90 = arith.mulf %88, %89 : vector<2x16x8xf32>
    %91 = vector.shape_cast %90 : vector<2x16x8xf32> to vector<32x8xf32>
    %c0_30 = arith.constant 0 : index
    %c16 = arith.constant 16 : index
    %92 = vector.load %arg9[%c0_30, %c16] : memref<32x32xf32, #tpu.memory_space<vmem>>, vector<32x8xf32>
    tpu.vector_store %arg9[%c0_30, %c16], %91 {strides = array<i32>} : memref<32x32xf32, #tpu.memory_space<vmem>>, vector<32x8xf32>,
    %93 = vector.extract_strided_slice %6 {offsets = [0, 72], sizes = [32, 8], strides = [1, 1]} : vector<32x96xbf16> to vector<32x8xbf16>
    %94 = vector.shape_cast %93 : vector<32x8xbf16> to vector<2x16x8xbf16>
    %95 = vector.extract_strided_slice %6 {offsets = [0, 80], sizes = [32, 8], strides = [1, 1]} : vector<32x96xbf16> to vector<32x8xbf16>
    %96 = vector.shape_cast %95 : vector<32x8xbf16> to vector<2x16x8xbf16>
    %97 = vector.extract_strided_slice %6 {offsets = [0, 88], sizes = [32, 8], strides = [1, 1]} : vector<32x96xbf16> to vector<32x8xbf16>
    %98 = vector.shape_cast %97 : vector<32x8xbf16> to vector<2x16x8xbf16>
    %cst_31 = arith.constant dense<0.000000e+00> : vector<2x16x16xf32>
    %99 = tpu.matmul %94, %96, %cst_31 {dimension_numbers = #tpu.dot_dimension_numbers<[2], [2], [1], [1], [0, 0, 0, 1, 1, 1], [0], [0]>} : vector<2x16x8xbf16>, vector<2x16x8xbf16>, vector<2x16x16xf32> -> vector<2x16x16xf32>
    %c3 = arith.constant 3 : index
    %c0_32 = arith.constant 0 : index
    %c0_33 = arith.constant 0 : index
    %100 = vector.load %arg6[%c3, %c0_32, %c0_33] : memref<4x16x16xbf16, #tpu.memory_space<vmem>>, vector<1x16x16xbf16>
    %101 = vector.shape_cast %100 : vector<1x16x16xbf16> to vector<16x16xbf16>
    %102 = arith.extf %101 : vector<16x16xbf16> to vector<16x16xf32>
    %103 = vector.shape_cast %102 : vector<16x16xf32> to vector<1x16x16xf32>
    %104 = vector.broadcast %103 : vector<1x16x16xf32> to vector<2x16x16xf32>
    %105 = arith.addf %99, %104 : vector<2x16x16xf32>
    %106 = arith.addf %105, %8 : vector<2x16x16xf32>
    %cst_34 = arith.constant dense<0xFF800000> : vector<2x16xf32>
    %107 = vector.multi_reduction <maximumf>, %106, %cst_34 [2] : vector<2x16x16xf32> to vector<2x16xf32>
    %108 = vector.shape_cast %107 : vector<2x16xf32> to vector<2x16x1xf32>
    %109 = vector.broadcast %108 : vector<2x16x1xf32> to vector<2x16x16xf32>
    %110 = arith.subf %106, %109 : vector<2x16x16xf32>
    %111 = math.exp %110 : vector<2x16x16xf32>
    %cst_35 = arith.constant dense<0.000000e+00> : vector<2x16xf32>
    %112 = vector.multi_reduction <add>, %111, %cst_35 [2] : vector<2x16x16xf32> to vector<2x16xf32>
    %113 = vector.shape_cast %112 : vector<2x16xf32> to vector<2x16x1xf32>
    %114 = arith.truncf %111 : vector<2x16x16xf32> to vector<2x16x16xbf16>
    %115 = tpu.reciprocal %113 {approx = true} : vector<2x16x1xf32> -> vector<2x16x1xf32>
    %cst_36 = arith.constant dense<0.000000e+00> : vector<2x16x8xf32>
    %116 = tpu.matmul %114, %98, %cst_36 {dimension_numbers = #tpu.dot_dimension_numbers<[2], [1], [1], [2], [0, 0, 0, 1, 1, 2], [0], [0]>} : vector<2x16x16xbf16>, vector<2x16x8xbf16>, vector<2x16x8xf32> -> vector<2x16x8xf32>
    %117 = vector.broadcast %115 : vector<2x16x1xf32> to vector<2x16x8xf32>
    %118 = arith.mulf %116, %117 : vector<2x16x8xf32>
    %119 = vector.shape_cast %118 : vector<2x16x8xf32> to vector<32x8xf32>
    %c0_37 = arith.constant 0 : index
    %c24 = arith.constant 24 : index
    %120 = vector.load %arg9[%c0_37, %c24] : memref<32x32xf32, #tpu.memory_space<vmem>>, vector<32x8xf32>
    tpu.vector_store %arg9[%c0_37, %c24], %119 {strides = array<i32>} : memref<32x32xf32, #tpu.memory_space<vmem>>, vector<32x8xf32>,
    %c0_38 = arith.constant 0 : index
    %c0_39 = arith.constant 0 : index
    %121 = vector.load %arg9[%c0_38, %c0_39] : memref<32x32xf32, #tpu.memory_space<vmem>>, vector<32x32xf32>
    %122 = arith.truncf %121 : vector<32x32xf32> to vector<32x32xbf16>
    %c0_40 = arith.constant 0 : index
    %c0_41 = arith.constant 0 : index
    %123 = vector.load %arg4[%c0_40, %c0_41] : memref<32x32xbf16, #tpu.memory_space<vmem>>, vector<32x32xbf16>
    %cst_42 = arith.constant dense<0.000000e+00> : vector<32x32xf32>
    %124 = tpu.matmul %122, %123, %cst_42 {dimension_numbers = #tpu.dot_dimension_numbers<[1], [0], [0], [1], [0, 0, 1, 1], [], []>} : vector<32x32xbf16>, vector<32x32xbf16>, vector<32x32xf32> -> vector<32x32xf32>
    %c0_43 = arith.constant 0 : index
    %c0_44 = arith.constant 0 : index
    %125 = vector.load %arg5[%c0_43, %c0_44] : memref<1x32xf32, #tpu.memory_space<vmem>>, vector<1x32xf32>
    %126 = vector.broadcast %125 : vector<1x32xf32> to vector<32x32xf32>
    %127 = arith.addf %124, %126 : vector<32x32xf32>
    %c0_45 = arith.constant 0 : index
    %c0_46 = arith.constant 0 : index
    %128 = vector.load %arg8[%c0_45, %c0_46] : memref<32x32xf32, #tpu.memory_space<vmem>>, vector<32x32xf32>
    tpu.vector_store %arg8[%c0_45, %c0_46], %127 {strides = array<i32>} : memref<32x32xf32, #tpu.memory_space<vmem>>, vector<32x32xf32>,
    return
  }
  func.func @transform_0(%arg0: i32) -> (i32, i32) {
    %c0_i32 = arith.constant 0 : i32
    %c0_i32_0 = arith.constant 0 : i32
    return %arg0, %c0_i32 : i32, i32
  }
  func.func @transform_1(%arg0: i32) -> (i32, i32) {
    %c0_i32 = arith.constant 0 : i32
    %c0_i32_0 = arith.constant 0 : i32
    %c0_i32_1 = arith.constant 0 : i32
    return %c0_i32, %c0_i32_0 : i32, i32
  }
  func.func @transform_2(%arg0: i32) -> (i32, i32) {
    %c0_i32 = arith.constant 0 : i32
    %c0_i32_0 = arith.constant 0 : i32
    %c0_i32_1 = arith.constant 0 : i32
    return %c0_i32, %c0_i32_0 : i32, i32
  }
  func.func @transform_3(%arg0: i32) -> (i32, i32) {
    %c0_i32 = arith.constant 0 : i32
    %c0_i32_0 = arith.constant 0 : i32
    %c0_i32_1 = arith.constant 0 : i32
    return %c0_i32, %c0_i32_0 : i32, i32
  }
  func.func @transform_4(%arg0: i32) -> (i32, i32) {
    %c0_i32 = arith.constant 0 : i32
    %c0_i32_0 = arith.constant 0 : i32
    %c0_i32_1 = arith.constant 0 : i32
    return %c0_i32, %c0_i32_0 : i32, i32
  }
  func.func @transform_5(%arg0: i32) -> (i32, i32, i32) {
    %c0_i32 = arith.constant 0 : i32
    %c0_i32_0 = arith.constant 0 : i32
    %c0_i32_1 = arith.constant 0 : i32
    %c0_i32_2 = arith.constant 0 : i32
    return %c0_i32, %c0_i32_0, %c0_i32_1 : i32, i32, i32
  }
  func.func @transform_6(%arg0: i32) -> (i32, i32, i32) {
    %c2_i32 = arith.constant 2 : i32
    %c0_i32 = arith.constant 0 : i32
    %0 = arith.cmpi eq, %c2_i32, %c0_i32 : i32
    %c1_i32 = arith.constant 1 : i32
    %1 = arith.select %0, %c1_i32, %c2_i32 : i32
    %2 = arith.remsi %arg0, %1 : i32
    %c0_i32_0 = arith.constant 0 : i32
    %3 = arith.cmpi ne, %2, %c0_i32_0 : i32
    %c0_i32_1 = arith.constant 0 : i32
    %4 = arith.cmpi slt, %2, %c0_i32_1 : i32
    %c0_i32_2 = arith.constant 0 : i32
    %5 = arith.cmpi slt, %1, %c0_i32_2 : i32
    %6 = arith.xori %4, %5 : i1
    %7 = arith.andi %6, %3 : i1
    %8 = arith.addi %2, %1 : i32
    %9 = arith.select %7, %8, %2 : i32
    %c0_i32_3 = arith.constant 0 : i32
    %c0_i32_4 = arith.constant 0 : i32
    %c0_i32_5 = arith.constant 0 : i32
    return %9, %c0_i32_3, %c0_i32_4 : i32, i32, i32
  }
  func.func @transform_7(%arg0: i32) -> (i32, i32) {
    %c0_i32 = arith.constant 0 : i32
    %c0_i32_0 = arith.constant 0 : i32
    return %arg0, %c0_i32 : i32, i32
  }
}

</mosaic_0001>

<llo_original>
// kernel: mul.9
$region0: #{mul.9}
  #allocation0 [shape = 's32[1]{0}', space=sflag, size = 0x4, scoped, tag = 'scoped memory for mul.9']
  %s0 = inlined_call_operand.vmem [shape: f32[96], index: 0, kind: input, shape index: {}]
  %s1 = inlined_call_operand.vmem [shape: f32[96], index: 1, kind: input, shape index: {}]
  %s2 = inlined_call_operand.vmem [shape: f32[96], index: 2, kind: output, shape index: {}]
  %v3 = vld [vmem:[%s0] sm:$0x1]
  %v4 = vld [vmem:[%s1] sm:$0x1]
  %5 = xla_tuple %v3, %v4
  %6 = xla_tuple %5
  %v7 = vmul.f32 %v3, %v4
  %8 = xla_tuple %v7
  %9 = vst [vmem:[%s2] sm:$0x1] %v7

// kernel: window_attention_forward.1
$region0: #{window_attention_forward.1}
  #allocation0 [shape = 'u32[]', space=smem, size = 0x4, offset = 0x4, fixed_abs, tag = 'smem constant byte address 0x4 - core index']
  #allocation1 [shape = 'u32[72,128]{1,0:T(1,128)}', space=vmem, size = 0x9000, scoped, tag = 'internal scratch']
  #allocation2 [shape = 'f32[32,32]{1,0:T(8,128)}', space=vmem, size = 0x4000, scoped, tag = 'scratch operand']
  %s0 = inlined_call_operand.vmem [shape: bf16[128,32], index: 0, kind: input, shape index: {}]
  %s1 = inlined_call_operand.vmem [shape: bf16[32,96], index: 1, kind: input, shape index: {}]
  %s2 = inlined_call_operand.vmem [shape: f32[1,96], index: 2, kind: input, shape index: {}]
  %s3 = inlined_call_operand.vmem [shape: bf16[32,32], index: 3, kind: input, shape index: {}]
  %s4 = inlined_call_operand.vmem [shape: f32[1,32], index: 4, kind: input, shape index: {}]
  %s5 = inlined_call_operand.vmem [shape: bf16[4,16,16], index: 5, kind: input, shape index: {}]
  %s6 = inlined_call_operand.vmem [shape: bf16[4,16,16], index: 6, kind: input, shape index: {}]
  %s7 = inlined_call_operand.hbm [shape: f32[128,32], index: 7, kind: output, shape index: {}]
  %s8 = sld [smem:[#allocation0]]
  $region61: #{window_attention_forward.1} parent=0
    _
  %s10 = ssub.s32 1, %s8
  %s11 = scalar_select 0, %s10, %s8
  $region1: #{window_attention_forward.1} parent=0
    #allocation3 [shape = 'u8[32768]{0}', space=vmem, size = 0x8000, scoped, tag = 'output window, operand 0']
    #allocation4 [shape = 's32[2]{0}', space=sflag, size = 0x8, scoped, tag = 'scoped memory for window_attention_forward.1']
    %12 = vsyncpa [#allocation4], 0
    %s13 = scalar_lea.sflag [#allocation4], 1
    %14 = vsyncpa %s13, 0
    loop: start=0, step=1, limit=6
    $region2: #{window_attention_forward.1} parent=1 // loop_pre_header
      _
    $region3: #{window_attention_forward.1} parent=1 // loop_header
      %s16 = sphi 0, %s20
      %p17 = scmp.ge.s32.totalorder %s16, 6
      %s26 = sphi 0, %s28
      %s29 = sphi 0, %s26
      %s30 = sphi 0, %s29
      %s46 = sphi 0, %s30
      %s50 = sphi 0, %s50
      %s52 = sphi 0, %s50
      %s53 = sphi 0, %s52
      %s67 = sphi 0, %s53
      %s71 = sphi 0, %s71
      %s73 = sphi 0, %s71
      %s74 = sphi 0, %s73
      %s88 = sphi 0, %s74
      %s92 = sphi 0, %s92
      %s94 = sphi 0, %s92
      %s95 = sphi 0, %s94
      %s109 = sphi 0, %s95
      %s113 = sphi 0, %s113
      %s115 = sphi 0, %s113
      %s116 = sphi 0, %s115
      %s130 = sphi 0, %s116
      %s134 = sphi 0, %s134
      %s136 = sphi 0, %s134
      %s137 = sphi 0, %s136
      %s151 = sphi 0, %s137
      %s181 = sphi 0, %s183
      %s184 = sphi 0, %s181
      %s185 = sphi 0, %s184
      %s201 = sphi 0, %s185
      %s207 = sphi 0, %s209
      %s210 = sphi 0, %s207
      %s211 = sphi 0, %s210
      %s227 = sphi 0, %s211
    $region4: #{window_attention_forward.1} parent=1 // loop_header_branch
      %19 = sbr.rel (%p17) target = $region8
    $region5: #{window_attention_forward.1} parent=1 // loop_body
      %s21 = ssub.s32 %s16, 1
      %s22 = ssub.s32 %s16, 2
      %s23 = sadd.s32 %s16, 1
      %s24 = ssub.s32 %s16, %s23
      %p25 = scmp.eq.s32.totalorder %s24, 0
      %s27 = sadd.s32 %s26, 1
      %s28 = scalar_select %p25, %s26, %s27
      %p31 = pneg %p25
      %p32 = scmp.eq.s32.totalorder %s16, 3
      %p33 = por %p31, %p32
      %p34 = scmp.ne.s32.totalorder %s26, %s29
      %p35 = scmp.eq.s32.totalorder %s16, 0
      %p36 = por %p34, %p35
      %p37 = scmp.ne.s32.totalorder %s26, %s29
      %p38 = scmp.eq.s32.totalorder %s21, 3
      %p39 = por %p37, %p38
      %p40 = scmp.ne.s32.totalorder %s29, %s30
      %p41 = scmp.eq.s32.totalorder %s21, 0
      %p42 = por %p40, %p41
      %p43 = scmp.ne.s32.totalorder %s29, %s30
      %p44 = scmp.eq.s32.totalorder %s22, 3
      %p45 = por %p43, %p44
      %p47 = scmp.ne.s32.totalorder %s30, %s46
      %p48 = scmp.eq.s32.totalorder %s22, 0
      %p49 = por %p47, %p48
      %s51 = sadd.s32 %s50, 1
      %p54 = scmp.eq.s32.totalorder %s16, 3
      %p55 = scmp.ne.s32.totalorder %s50, %s52
      %p56 = scmp.eq.s32.totalorder %s16, 0
      %p57 = por %p55, %p56
      %p58 = scmp.ne.s32.totalorder %s50, %s52
      %p59 = scmp.eq.s32.totalorder %s21, 3
      %p60 = por %p58, %p59
      %p61 = scmp.ne.s32.totalorder %s52, %s53
      %p62 = scmp.eq.s32.totalorder %s21, 0
      %p63 = por %p61, %p62
      %p64 = scmp.ne.s32.totalorder %s52, %s53
      %p65 = scmp.eq.s32.totalorder %s22, 3
      %p66 = por %p64, %p65
      %p68 = scmp.ne.s32.totalorder %s53, %s67
      %p69 = scmp.eq.s32.totalorder %s22, 0
      %p70 = por %p68, %p69
      %s72 = sadd.s32 %s71, 1
      %p75 = scmp.eq.s32.totalorder %s16, 3
      %p76 = scmp.ne.s32.totalorder %s71, %s73
      %p77 = scmp.eq.s32.totalorder %s16, 0
      %p78 = por %p76, %p77
      %p79 = scmp.ne.s32.totalorder %s71, %s73
      %p80 = scmp.eq.s32.totalorder %s21, 3
      %p81 = por %p79, %p80
      %p82 = scmp.ne.s32.totalorder %s73, %s74
      %p83 = scmp.eq.s32.totalorder %s21, 0
      %p84 = por %p82, %p83
      %p85 = scmp.ne.s32.totalorder %s73, %s74
      %p86 = scmp.eq.s32.totalorder %s22, 3
      %p87 = por %p85, %p86
      %p89 = scmp.ne.s32.totalorder %s74, %s88
      %p90 = scmp.eq.s32.totalorder %s22, 0
      %p91 = por %p89, %p90
      %s93 = sadd.s32 %s92, 1
      %p96 = scmp.eq.s32.totalorder %s16, 3
      %p97 = scmp.ne.s32.totalorder %s92, %s94
      %p98 = scmp.eq.s32.totalorder %s16, 0
      %p99 = por %p97, %p98
      %p100 = scmp.ne.s32.totalorder %s92, %s94
      %p101 = scmp.eq.s32.totalorder %s21, 3
      %p102 = por %p100, %p101
      %p103 = scmp.ne.s32.totalorder %s94, %s95
      %p104 = scmp.eq.s32.totalorder %s21, 0
      %p105 = por %p103, %p104
      %p106 = scmp.ne.s32.totalorder %s94, %s95
      %p107 = scmp.eq.s32.totalorder %s22, 3
      %p108 = por %p106, %p107
      %p110 = scmp.ne.s32.totalorder %s95, %s109
      %p111 = scmp.eq.s32.totalorder %s22, 0
      %p112 = por %p110, %p111
      %s114 = sadd.s32 %s113, 1
      %p117 = scmp.eq.s32.totalorder %s16, 3
      %p118 = scmp.ne.s32.totalorder %s113, %s115
      %p119 = scmp.eq.s32.totalorder %s16, 0
      %p120 = por %p118, %p119
      %p121 = scmp.ne.s32.totalorder %s113, %s115
      %p122 = scmp.eq.s32.totalorder %s21, 3
      %p123 = por %p121, %p122
      %p124 = scmp.ne.s32.totalorder %s115, %s116
      %p125 = scmp.eq.s32.totalorder %s21, 0
      %p126 = por %p124, %p125
      %p127 = scmp.ne.s32.totalorder %s115, %s116
      %p128 = scmp.eq.s32.totalorder %s22, 3
      %p129 = por %p127, %p128
      %p131 = scmp.ne.s32.totalorder %s116, %s130
      %p132 = scmp.eq.s32.totalorder %s22, 0
      %p133 = por %p131, %p132
      %s135 = sadd.s32 %s134, 1
      %p138 = scmp.eq.s32.totalorder %s16, 3
      %p139 = scmp.ne.s32.totalorder %s134, %s136
      %p140 = scmp.eq.s32.totalorder %s16, 0
      %p141 = por %p139, %p140
      %p142 = scmp.ne.s32.totalorder %s134, %s136
      %p143 = scmp.eq.s32.totalorder %s21, 3
      %p144 = por %p142, %p143
      %p145 = scmp.ne.s32.totalorder %s136, %s137
      %p146 = scmp.eq.s32.totalorder %s21, 0
      %p147 = por %p145, %p146
      %p148 = scmp.ne.s32.totalorder %s136, %s137
      %p149 = scmp.eq.s32.totalorder %s22, 3
      %p150 = por %p148, %p149
      %p152 = scmp.ne.s32.totalorder %s137, %s151
      %p153 = scmp.eq.s32.totalorder %s22, 0
      %p154 = por %p152, %p153
      %p155 = scmp.lt.s32.totalorder %s16, 0
      %s156 = ssub.s32 0, %s16
      %s157 = scalar_select %p155, %s156, %s16
      %s158 = sand.u32 %s157, 1
      %s159 = ssub.s32 0, %s158
      %s160 = scalar_select %p155, %s159, %s158
      %p161 = scmp.ne.s32.totalorder %s160, 0
      %p162 = scmp.lt.s32.totalorder %s160, 0
      %p163 = pnand %p162, %p161
      %p164 = pneg %p163
      %s165 = sadd.s32 %s160, 2
      %s166 = scalar_select %p164, %s165, %s160
      %p167 = scmp.lt.s32.totalorder %s23, 0
      %s168 = ssub.s32 0, %s23
      %s169 = scalar_select %p167, %s168, %s23
      %s170 = sand.u32 %s169, 1
      %s171 = ssub.s32 0, %s170
      %s172 = scalar_select %p167, %s171, %s170
      %p173 = scmp.ne.s32.totalorder %s172, 0
      %p174 = scmp.lt.s32.totalorder %s172, 0
      %p175 = pnand %p174, %p173
      %p176 = pneg %p175
      %s177 = sadd.s32 %s172, 2
      %s178 = scalar_select %p176, %s177, %s172
      %s179 = ssub.s32 %s166, %s178
      %p180 = scmp.eq.s32.totalorder %s179, 0
      %s182 = sadd.s32 %s181, 1
      %s183 = scalar_select %p180, %s181, %s182
      %p186 = pneg %p180
      %p187 = scmp.eq.s32.totalorder %s16, 3
      %p188 = por %p186, %p187
      %p189 = scmp.ne.s32.totalorder %s181, %s184
      %p190 = scmp.eq.s32.totalorder %s16, 0
      %p191 = por %p189, %p190
      %p192 = scmp.ne.s32.totalorder %s181, %s184
      %p193 = scmp.eq.s32.totalorder %s21, 3
      %p194 = por %p192, %p193
      %p195 = scmp.ne.s32.totalorder %s184, %s185
      %p196 = scmp.eq.s32.totalorder %s21, 0
      %p197 = por %p195, %p196
      %p198 = scmp.ne.s32.totalorder %s184, %s185
      %p199 = scmp.eq.s32.totalorder %s22, 3
      %p200 = por %p198, %p199
      %p202 = scmp.ne.s32.totalorder %s185, %s201
      %p203 = scmp.eq.s32.totalorder %s22, 0
      %p204 = por %p202, %p203
      %s205 = ssub.s32 %s16, %s23
      %p206 = scmp.eq.s32.totalorder %s205, 0
      %s208 = sadd.s32 %s207, 1
      %s209 = scalar_select %p206, %s207, %s208
      %p212 = pneg %p206
      %p213 = scmp.eq.s32.totalorder %s16, 3
      %p214 = por %p212, %p213
      %p215 = scmp.ne.s32.totalorder %s207, %s210
      %p216 = scmp.eq.s32.totalorder %s16, 0
      %p217 = por %p215, %p216
      %p218 = scmp.ne.s32.totalorder %s207, %s210
      %p219 = scmp.eq.s32.totalorder %s21, 3
      %p220 = por %p218, %p219
      %p221 = scmp.ne.s32.totalorder %s210, %s211
      %p222 = scmp.eq.s32.totalorder %s21, 0
      %p223 = por %p221, %p222
      %p224 = scmp.ne.s32.totalorder %s210, %s211
      %p225 = scmp.eq.s32.totalorder %s22, 3
      %p226 = por %p224, %p225
      %p228 = scmp.ne.s32.totalorder %s211, %s227
      %p229 = scmp.eq.s32.totalorder %s22, 0
      %p230 = por %p228, %p229
      %p231 = scmp.le.s32.totalorder 1, %s16
      %p232 = scmp.lt.s32.totalorder %s16, 5
      %p233 = pnand %p231, %p232
      %p234 = pneg %p233
      // Predicated region
      $region9: #{window_attention_forward.1} parent=5 // pred_check
        _
      $region10: #{window_attention_forward.1} parent=5 // pred_check_branch
        %236 = sbr.rel (%p233) target = $region12
      $region11: #{window_attention_forward.1} parent=5 // pred_region
        %s237 = ssub.s32 %s16, 1
        // Predicated region
        $region13: #{window_attention_forward.1} parent=11 // pred_check
          %p238 = pneg %p63
        $region14: #{window_attention_forward.1} parent=11 // pred_check_branch
          %240 = sbr.rel (%p238) target = $region16
        $region15: #{window_attention_forward.1} parent=11 // pred_region
          _
        $region16: #{window_attention_forward.1} parent=11 // pred_fallthru
          _
        // Predicated region
        $region17: #{window_attention_forward.1} parent=11 // pred_check
          %p241 = pneg %p84
        $region18: #{window_attention_forward.1} parent=11 // pred_check_branch
          %243 = sbr.rel (%p241) target = $region20
        $region19: #{window_attention_forward.1} parent=11 // pred_region
          _
        $region20: #{window_attention_forward.1} parent=11 // pred_fallthru
          _
        // Predicated region
        $region21: #{window_attention_forward.1} parent=11 // pred_check
          %p244 = pneg %p105
        $region22: #{window_attention_forward.1} parent=11 // pred_check_branch
          %246 = sbr.rel (%p244) target = $region24
        $region23: #{window_attention_forward.1} parent=11 // pred_region
          _
        $region24: #{window_attention_forward.1} parent=11 // pred_fallthru
          _
        // Predicated region
        $region25: #{window_attention_forward.1} parent=11 // pred_check
          %p247 = pneg %p126
        $region26: #{window_attention_forward.1} parent=11 // pred_check_branch
          %249 = sbr.rel (%p247) target = $region28
        $region27: #{window_attention_forward.1} parent=11 // pred_region
          _
        $region28: #{window_attention_forward.1} parent=11 // pred_fallthru
          _
        // Predicated region
        $region29: #{window_attention_forward.1} parent=11 // pred_check
          %p250 = pneg %p147
        $region30: #{window_attention_forward.1} parent=11 // pred_check_branch
          %252 = sbr.rel (%p250) target = $region32
        $region31: #{window_attention_forward.1} parent=11 // pred_region
          _
        $region32: #{window_attention_forward.1} parent=11 // pred_fallthru
          _
      $region12: #{window_attention_forward.1} parent=5 // pred_fallthru
        _
      %p253 = scmp.lt.s32.totalorder %s16, 4
      // Predicated region
      $region33: #{window_attention_forward.1} parent=5 // pred_check
        %p254 = pneg %p253
      $region34: #{window_attention_forward.1} parent=5 // pred_check_branch
        %256 = sbr.rel (%p254) target = $region36
      $region35: #{window_attention_forward.1} parent=5 // pred_region
        // Predicated region
        $region37: #{window_attention_forward.1} parent=35 // pred_check
          %p257 = pneg %p36
        $region38: #{window_attention_forward.1} parent=35 // pred_check_branch
          %259 = sbr.rel (%p257) target = $region40
        $region39: #{window_attention_forward.1} parent=35 // pred_region
          %s260 = smul.u32 4, %s16
          %p261 = scmp.lt.s32.totalorder %s260, 15
          %s262 = scalar_select %p261, %s260, 15
          %s263 = smul.addr %s262, 4
          %s264 = scalar_lea.vmem %s0, %s263
          %s265 = smul.u32 4, %s16
        $region40: #{window_attention_forward.1} parent=35 // pred_fallthru
          _
        // Predicated region
        $region41: #{window_attention_forward.1} parent=35 // pred_check
          %p266 = pneg %p191
        $region42: #{window_attention_forward.1} parent=35 // pred_check_branch
          %268 = sbr.rel (%p266) target = $region44
        $region43: #{window_attention_forward.1} parent=35 // pred_region
          %p269 = scmp.lt.s32.totalorder %s16, 0
          %s270 = ssub.s32 0, %s16
          %s271 = scalar_select %p269, %s270, %s16
          %s272 = sand.u32 %s271, 1
          %s273 = ssub.s32 0, %s272
          %s274 = scalar_select %p269, %s273, %s272
          %p275 = scmp.ne.s32.totalorder %s274, 0
          %p276 = scmp.lt.s32.totalorder %s274, 0
          %p277 = pnand %p276, %p275
          %p278 = pneg %p277
          %s279 = sadd.s32 %s274, 2
          %s280 = scalar_select %p278, %s279, %s274
          %s281 = smul.u32 2, %s280
          %p282 = scmp.lt.s32.totalorder %s281, 3
          %s283 = scalar_select %p282, %s281, 3
          %s284 = smul.addr %s283, 2
          %s285 = smul.addr %s284, 4
          %s286 = scalar_lea.vmem %s6, %s285
          %p287 = scmp.lt.s32.totalorder %s16, 0
          %s288 = ssub.s32 0, %s16
          %s289 = scalar_select %p287, %s288, %s16
          %s290 = sand.u32 %s289, 1
          %s291 = ssub.s32 0, %s290
          %s292 = scalar_select %p287, %s291, %s290
          %p293 = scmp.ne.s32.totalorder %s292, 0
          %p294 = scmp.lt.s32.totalorder %s292, 0
          %p295 = pnand %p294, %p293
          %p296 = pneg %p295
          %s297 = sadd.s32 %s292, 2
          %s298 = scalar_select %p296, %s297, %s292
          %s299 = smul.u32 2, %s298
        $region44: #{window_attention_forward.1} parent=35 // pred_fallthru
          _
      $region36: #{window_attention_forward.1} parent=5 // pred_fallthru
        _
      %p300 = scmp.le.s32.totalorder 1, %s16
      %p301 = scmp.lt.s32.totalorder %s16, 5
      %p302 = pnand %p300, %p301
      %p303 = pneg %p302
      // Predicated region
      $region45: #{window_attention_forward.1} parent=5 // pred_check
        _
      $region46: #{window_attention_forward.1} parent=5 // pred_check_branch
        %305 = sbr.rel (%p302) target = $region48
      $region47: #{window_attention_forward.1} parent=5 // pred_region
        %s306 = ssub.s32 %s16, 1
        %s307 = smul.u32 4, %s21
        %p308 = scmp.lt.s32.totalorder %s307, 15
        %s309 = scalar_select %p308, %s307, 15
        %s310 = smul.addr %s309, 4
        %s311 = scalar_lea.vmem %s0, %s310
        %p312 = pneg %p42
        %p313 = pneg %p39
        %p314 = pneg %p63
        %p315 = pneg %p60
        %p316 = pneg %p84
        %p317 = pneg %p81
        %p318 = pneg %p105
        %p319 = pneg %p102
        %p320 = pneg %p126
        %p321 = pneg %p123
        %p322 = pneg %p147
        %p323 = pneg %p144
        %p324 = scmp.lt.s32.totalorder %s21, 0
        %s325 = ssub.s32 0, %s21
        %s326 = scalar_select %p324, %s325, %s21
        %s327 = sand.u32 %s326, 1
        %s328 = ssub.s32 0, %s327
        %s329 = scalar_select %p324, %s328, %s327
        %p330 = scmp.ne.s32.totalorder %s329, 0
        %p331 = scmp.lt.s32.totalorder %s329, 0
        %p332 = pnand %p331, %p330
        %p333 = pneg %p332
        %s334 = sadd.s32 %s329, 2
        %s335 = scalar_select %p333, %s334, %s329
        %s336 = smul.u32 2, %s335
        %p337 = scmp.lt.s32.totalorder %s336, 3
        %s338 = scalar_select %p337, %s336, 3
        %s339 = smul.addr %s338, 2
        %s340 = smul.addr %s339, 4
        %s341 = scalar_lea.vmem %s6, %s340
        %p342 = pneg %p197
        %p343 = pneg %p194
        %p344 = pneg %p223
        %p345 = pneg %p220
        %s346 = sand.u32 %s210, 1
        %s347 = scalar_lea.sflag [#allocation4], %s346
        %s348 = sand.u32 %s210, 1
        %s349 = smul.addr %s348, 32
        %s350 = scalar_lea.vmem [#allocation3], %s349
        %s351 = smul.u32 4, %s21
        %p352 = scmp.lt.s32.totalorder %s351, 15
        %s353 = scalar_select %p352, %s351, 15
        %s354 = smul.addr %s353, 4
        %s355 = scalar_lea.vmem %s0, %s354
        %s356 = smul.u32 4, %s21
        %p357 = scmp.lt.s32.totalorder %s21, 0
        %s358 = ssub.s32 0, %s21
        %s359 = scalar_select %p357, %s358, %s21
        %s360 = sand.u32 %s359, 1
        %s361 = ssub.s32 0, %s360
        %s362 = scalar_select %p357, %s361, %s360
        %p363 = scmp.ne.s32.totalorder %s362, 0
        %p364 = scmp.lt.s32.totalorder %s362, 0
        %p365 = pnand %p364, %p363
        %p366 = pneg %p365
        %s367 = sadd.s32 %s362, 2
        %s368 = scalar_select %p366, %s367, %s362
        %s369 = smul.u32 2, %s368
        %p370 = scmp.lt.s32.totalorder %s369, 3
        %s371 = scalar_select %p370, %s369, 3
        %s372 = smul.addr %s371, 2
        %s373 = smul.addr %s372, 4
        %s374 = scalar_lea.vmem %s6, %s373
        %p375 = scmp.lt.s32.totalorder %s21, 0
        %s376 = ssub.s32 0, %s21
        %s377 = scalar_select %p375, %s376, %s21
        %s378 = sand.u32 %s377, 1
        %s379 = ssub.s32 0, %s378
        %s380 = scalar_select %p375, %s379, %s378
        %p381 = scmp.ne.s32.totalorder %s380, 0
        %p382 = scmp.lt.s32.totalorder %s380, 0
        %p383 = pnand %p382, %p381
        %p384 = pneg %p383
        %s385 = sadd.s32 %s380, 2
        %s386 = scalar_select %p384, %s385, %s380
        %s387 = smul.u32 2, %s386
        %s388 = smul.u32 4, %s21
        %v390 = vld [vmem:[%s355] sm:$0xf]
        %v391 = vld [vmem:[%s355 + $0x4] sm:$0xf]
        %v392 = vld [vmem:[%s355 + $0x8] sm:$0xf]
        %v393 = vld [vmem:[%s355 + $0xc] sm:$0xf]
        %v394 = vld [vmem:[%s1] sm:$0xf]
        %v395 = vld [vmem:[%s1 + $0x4] sm:$0xf]
        %v396 = vld [vmem:[%s1 + $0x8] sm:$0xf]
        %v397 = vld [vmem:[%s1 + $0xc] sm:$0xf]
        %v398 = vld [vmem:[%s2] sm:$0x1]
        %v400 = vperm.slane %v398, 0
        %v406 = vunpack.c.l.b16 %v390
        %v407 = vunpack.c.l.b16 %v391
        %v408 = vunpack.c.l.b16 %v392
        %v409 = vunpack.c.l.b16 %v393
        %v410 = vpack.c.b16 %v407, %v406
        %v411 = vpack.c.b16 %v409, %v408
        %v416 = vunpack.c.l.b16 %v394
        %v417 = vunpack.c.l.b16 %v395
        %v418 = vunpack.c.l.b16 %v396
        %v419 = vunpack.c.l.b16 %v397
        %v420 = vpack.c.b16 %v417, %v416
        %v421 = vpack.c.b16 %v419, %v418
        %vm424 = vcmask 261120
        %v426 = vsel %vm424, %v410, 0
        %v429 = vsel %vm424, %v411, 0
        %431 = vmatpush.bf16.msra.mxu0 0
        %432 = vmatpush.bf16.msra.mxu0 0
        %433 = vmatpush.bf16.msra.mxu0 0
        %434 = vmatpush.bf16.msra.mxu0 0
        %435 = vmatpush.bf16.msra.mxu0 0
        %436 = vmatpush.bf16.msra.mxu0 0
        %437 = vmatpush.bf16.msra.mxu0 %v421
        %438 = vmatpush.bf16.msra.mxu0 %v420
        %439 = vmatmul.bf16.gmra.mxu0 %v426
        %v440 = vpop.f32.mrf.mxu0
        %v441 = vadd.f32 %v400, %v440
        %v442 = vpop.f32.mrf.mxu0
        %v443 = vadd.f32 %v400, %v442
        %444 = vmatmul.bf16.gmra.mxu0 %v429
        %v445 = vpop.f32.mrf.mxu0
        %v446 = vadd.f32 %v400, %v445
        %v447 = vpop.f32.mrf.mxu0
        %v448 = vadd.f32 %v400, %v447
        %449 = vdwg.mxu0
        %v450 = vpack.c.bf16 %v441, %v441
        %v451 = vpack.c.bf16 %v443, %v443
        %v452 = vpack.c.bf16 %v446, %v446
        %v453 = vpack.c.bf16 %v448, %v448
        %v454 = vld [vmem:[%s374] sm:$0xf]
        %v455 = vld [vmem:[%s374 + $0x4] sm:$0xf]
        %v456 = vld [vmem:[%s374 + $0x8] sm:$0xf]
        %v457 = vld [vmem:[%s374 + $0xc] sm:$0xf]
        %v458 = vunpack.c.l.bf16 %v454
        %v459 = vunpack.c.l.bf16 %v455
        %v460 = vunpack.c.l.bf16 %v456
        %v461 = vunpack.c.l.bf16 %v457
        %v462 = vld [vmem:[%s5] sm:$0xf]
        %v463 = vld [vmem:[%s5 + $0x4] sm:$0xf]
        %v464 = vunpack.c.l.bf16 %v462
        %v465 = vunpack.c.l.bf16 %v463
        %v468 = vunpack.c.l.b16 %v450
        %v469 = vunpack.c.l.b16 %v451
        %v470 = vpack.c.b16 %v469, %v468
        %471 = vrot.lane.b32.xlu0 %v470, 120
        %v472 = vpop.permute.xlu0 %471
        %vm473 = vcmask 64512
        %v475 = vsel %vm473, %v470, 0
        %v478 = vsel %vm473, %v472, 0
        %480 = vmatpush.bf16.xpose.msra.mxu0 0
        %481 = vmatpush.bf16.xpose.msra.mxu0 0
        %482 = vmatpush.bf16.xpose.msra.mxu0 0
        %483 = vmatpush.bf16.xpose.msra.mxu0 0
        %484 = vmatpush.bf16.xpose.msra.mxu0 0
        %485 = vmatpush.bf16.xpose.msra.mxu0 0
        %486 = vmatpush.bf16.xpose.msra.mxu0 0
        %487 = vmatpush.bf16.xpose.msra.mxu0 %v478
        %488 = vmatmul.bf16.gmra.mxu0 %v475
        %v489 = vpop.f32.mrf.mxu0
        %v490 = vadd.f32 %v464, %v489
        %v491 = vpop.f32.mrf.mxu0
        %v492 = vadd.f32 %v465, %v491
        %493 = vdwg.mxu0
        %v496 = vunpack.c.l.b16 %v452
        %v497 = vunpack.c.l.b16 %v453
        %v498 = vpack.c.b16 %v497, %v496
        %499 = vrot.lane.b32.xlu0 %v498, 120
        %v500 = vpop.permute.xlu0 %499
        %v502 = vsel %vm473, %v498, 0
        %v505 = vsel %vm473, %v500, 0
        %507 = vmatpush.bf16.xpose.msra.mxu0 0
        %508 = vmatpush.bf16.xpose.msra.mxu0 0
        %509 = vmatpush.bf16.xpose.msra.mxu0 0
        %510 = vmatpush.bf16.xpose.msra.mxu0 0
        %511 = vmatpush.bf16.xpose.msra.mxu0 0
        %512 = vmatpush.bf16.xpose.msra.mxu0 0
        %513 = vmatpush.bf16.xpose.msra.mxu0 0
        %514 = vmatpush.bf16.xpose.msra.mxu0 %v505
        %515 = vmatmul.bf16.gmra.mxu0 %v502
        %v516 = vpop.f32.mrf.mxu0
        %v517 = vadd.f32 %v464, %v516
        %v518 = vpop.f32.mrf.mxu0
        %v519 = vadd.f32 %v465, %v518
        %520 = vdwg.mxu0
        %v521 = vadd.f32 %v490, %v458
        %v522 = vadd.f32 %v492, %v459
        %v523 = vadd.f32 %v517, %v460
        %v524 = vadd.f32 %v519, %v461
        %vm525 = vcmask 130048
        %v526 = vsel %vm525, %v521, -inf
        %527 = vmax.xlane.f32.xlu0 %v526
        %v528 = vpop.xlane.xlu0 %527
        %v529 = vsel %vm525, %v522, -inf
        %530 = vmax.xlane.f32.xlu0 %v529
        %v531 = vpop.xlane.xlu0 %530
        %v532 = vsel %vm525, %v523, -inf
        %533 = vmax.xlane.f32.xlu0 %v532
        %v534 = vpop.xlane.xlu0 %533
        %v535 = vsel %vm525, %v524, -inf
        %536 = vmax.xlane.f32.xlu0 %v535
        %v537 = vpop.xlane.xlu0 %536
        %v538 = vsub.f32 %v521, %v528
        %v539 = vsub.f32 %v522, %v531
        %v540 = vsub.f32 %v523, %v534
        %v541 = vsub.f32 %v524, %v537
        %v542 = vmul.f32 %v538, 1.442695
        %v543 = vpow.pop %v542
        %v544 = vmul.f32 %v539, 1.442695
        %v545 = vpow.pop %v544
        %v546 = vmul.f32 %v540, 1.442695
        %v547 = vpow.pop %v546
        %v548 = vmul.f32 %v541, 1.442695
        %v549 = vpow.pop %v548
        %v550 = vsel %vm525, %v543, 0.0
        %551 = vadd.xlane.f32.xlu0 %v550
        %v552 = vpop.xlane.xlu0 %551
        %v553 = vsel %vm525, %v545, 0.0
        %554 = vadd.xlane.f32.xlu0 %v553
        %v555 = vpop.xlane.xlu0 %554
        %v556 = vsel %vm525, %v547, 0.0
        %557 = vadd.xlane.f32.xlu0 %v556
        %v558 = vpop.xlane.xlu0 %557
        %v559 = vsel %vm525, %v549, 0.0
        %560 = vadd.xlane.f32.xlu0 %v559
        %v561 = vpop.xlane.xlu0 %560
        %v562 = vpack.c.bf16 %v543, %v543
        %v563 = vpack.c.bf16 %v545, %v545
        %v564 = vpack.c.bf16 %v547, %v547
        %v565 = vpack.c.bf16 %v549, %v549
        %v566 = vrcp.pop %v552
        %v567 = vrcp.pop %v555
        %v568 = vrcp.pop %v558
        %v569 = vrcp.pop %v561
        %v572 = vunpack.c.l.b16 %v562
        %v573 = vunpack.c.l.b16 %v563
        %v574 = vpack.c.b16 %v573, %v572
        %575 = vrot.lane.b32.xlu0 %v470, 112
        %v576 = vpop.permute.xlu0 %575
        %v579 = vsel %vm525, %v574, 0
        %581 = vmatpush.bf16.msra.mxu0 0
        %582 = vmatpush.bf16.msra.mxu0 0
        %583 = vmatpush.bf16.msra.mxu0 0
        %584 = vmatpush.bf16.msra.mxu0 0
        %585 = vmatpush.bf16.msra.mxu0 0
        %586 = vmatpush.bf16.msra.mxu0 0
        %587 = vmatpush.bf16.msra.mxu0 0
        %588 = vmatpush.bf16.msra.mxu0 %v576
        %589 = vmatmul.bf16.gmra.mxu0 %v579
        %v590 = vpop.f32.mrf.mxu0
        %v591 = vadd.f32 0.0, %v590
        %v592 = vpop.f32.mrf.mxu0
        %v593 = vadd.f32 0.0, %v592
        %594 = vdwg.mxu0
        %v597 = vunpack.c.l.b16 %v564
        %v598 = vunpack.c.l.b16 %v565
        %v599 = vpack.c.b16 %v598, %v597
        %600 = vrot.lane.b32.xlu0 %v498, 112
        %v601 = vpop.permute.xlu0 %600
        %v604 = vsel %vm525, %v599, 0
        %606 = vmatpush.bf16.msra.mxu0 0
        %607 = vmatpush.bf16.msra.mxu0 0
        %608 = vmatpush.bf16.msra.mxu0 0
        %609 = vmatpush.bf16.msra.mxu0 0
        %610 = vmatpush.bf16.msra.mxu0 0
        %611 = vmatpush.bf16.msra.mxu0 0
        %612 = vmatpush.bf16.msra.mxu0 0
        %613 = vmatpush.bf16.msra.mxu0 %v601
        %614 = vmatmul.bf16.gmra.mxu0 %v604
        %v615 = vpop.f32.mrf.mxu0
        %v616 = vadd.f32 0.0, %v615
        %v617 = vpop.f32.mrf.mxu0
        %v618 = vadd.f32 0.0, %v617
        %619 = vdwg.mxu0
        %v620 = vmul.f32 %v591, %v566
        %v621 = vmul.f32 %v593, %v567
        %v622 = vmul.f32 %v616, %v568
        %v623 = vmul.f32 %v618, %v569
        %624 = vst.msk [vmem:[#allocation2] sm:$0xff] %vm473, %v620
        %625 = vst.msk [vmem:[#allocation2 + $0x8] sm:$0xff] %vm473, %v621
        %626 = vst.msk [vmem:[#allocation2 + $0x10] sm:$0xff] %vm473, %v622
        %627 = vst.msk [vmem:[#allocation2 + $0x18] sm:$0xff] %vm473, %v623
        %s628 = scalar_lea.vmem %s5, 8
        %v629 = vld [vmem:[%s628] sm:$0xf]
        %v630 = vld [vmem:[%s628 + $0x4] sm:$0xf]
        %v631 = vunpack.c.l.bf16 %v629
        %v632 = vunpack.c.l.bf16 %v630
        %633 = vrot.lane.b32.xlu0 %v470, 104
        %v634 = vpop.permute.xlu0 %633
        %635 = vrot.lane.b32.xlu0 %v470, 96
        %v636 = vpop.permute.xlu0 %635
        %v638 = vsel %vm473, %v634, 0
        %v641 = vsel %vm473, %v636, 0
        %643 = vmatpush.bf16.xpose.msra.mxu0 0
        %644 = vmatpush.bf16.xpose.msra.mxu0 0
        %645 = vmatpush.bf16.xpose.msra.mxu0 0
        %646 = vmatpush.bf16.xpose.msra.mxu0 0
        %647 = vmatpush.bf16.xpose.msra.mxu0 0
        %648 = vmatpush.bf16.xpose.msra.mxu0 0
        %649 = vmatpush.bf16.xpose.msra.mxu0 0
        %650 = vmatpush.bf16.xpose.msra.mxu0 %v641
        %651 = vmatmul.bf16.gmra.mxu0 %v638
        %v652 = vpop.f32.mrf.mxu0
        %v653 = vadd.f32 %v631, %v652
        %v654 = vpop.f32.mrf.mxu0
        %v655 = vadd.f32 %v632, %v654
        %656 = vdwg.mxu0
        %657 = vrot.lane.b32.xlu0 %v498, 104
        %v658 = vpop.permute.xlu0 %657
        %659 = vrot.lane.b32.xlu0 %v498, 96
        %v660 = vpop.permute.xlu0 %659
        %v662 = vsel %vm473, %v658, 0
        %v665 = vsel %vm473, %v660, 0
        %667 = vmatpush.bf16.xpose.msra.mxu0 0
        %668 = vmatpush.bf16.xpose.msra.mxu0 0
        %669 = vmatpush.bf16.xpose.msra.mxu0 0
        %670 = vmatpush.bf16.xpose.msra.mxu0 0
        %671 = vmatpush.bf16.xpose.msra.mxu0 0
        %672 = vmatpush.bf16.xpose.msra.mxu0 0
        %673 = vmatpush.bf16.xpose.msra.mxu0 0
        %674 = vmatpush.bf16.xpose.msra.mxu0 %v665
        %675 = vmatmul.bf16.gmra.mxu0 %v662
        %v676 = vpop.f32.mrf.mxu0
        %v677 = vadd.f32 %v631, %v676
        %v678 = vpop.f32.mrf.mxu0
        %v679 = vadd.f32 %v632, %v678
        %680 = vdwg.mxu0
        %v681 = vadd.f32 %v653, %v458
        %v682 = vadd.f32 %v655, %v459
        %v683 = vadd.f32 %v677, %v460
        %v684 = vadd.f32 %v679, %v461
        %v685 = vsel %vm525, %v681, -inf
        %686 = vmax.xlane.f32.xlu0 %v685
        %v687 = vpop.xlane.xlu0 %686
        %v688 = vsel %vm525, %v682, -inf
        %689 = vmax.xlane.f32.xlu0 %v688
        %v690 = vpop.xlane.xlu0 %689
        %v691 = vsel %vm525, %v683, -inf
        %692 = vmax.xlane.f32.xlu0 %v691
        %v693 = vpop.xlane.xlu0 %692
        %v694 = vsel %vm525, %v684, -inf
        %695 = vmax.xlane.f32.xlu0 %v694
        %v696 = vpop.xlane.xlu0 %695
        %v697 = vsub.f32 %v681, %v687
        %v698 = vsub.f32 %v682, %v690
        %v699 = vsub.f32 %v683, %v693
        %v700 = vsub.f32 %v684, %v696
        %v701 = vmul.f32 %v697, 1.442695
        %v702 = vpow.pop %v701
        %v703 = vmul.f32 %v698, 1.442695
        %v704 = vpow.pop %v703
        %v705 = vmul.f32 %v699, 1.442695
        %v706 = vpow.pop %v705
        %v707 = vmul.f32 %v700, 1.442695
        %v708 = vpow.pop %v707
        %v709 = vsel %vm525, %v702, 0.0
        %710 = vadd.xlane.f32.xlu0 %v709
        %v711 = vpop.xlane.xlu0 %710
        %v712 = vsel %vm525, %v704, 0.0
        %713 = vadd.xlane.f32.xlu0 %v712
        %v714 = vpop.xlane.xlu0 %713
        %v715 = vsel %vm525, %v706, 0.0
        %716 = vadd.xlane.f32.xlu0 %v715
        %v717 = vpop.xlane.xlu0 %716
        %v718 = vsel %vm525, %v708, 0.0
        %719 = vadd.xlane.f32.xlu0 %v718
        %v720 = vpop.xlane.xlu0 %719
        %v721 = vpack.c.bf16 %v702, %v702
        %v722 = vpack.c.bf16 %v704, %v704
        %v723 = vpack.c.bf16 %v706, %v706
        %v724 = vpack.c.bf16 %v708, %v708
        %v725 = vrcp.pop %v711
        %v726 = vrcp.pop %v714
        %v727 = vrcp.pop %v717
        %v728 = vrcp.pop %v720
        %v731 = vunpack.c.l.b16 %v721
        %v732 = vunpack.c.l.b16 %v722
        %v733 = vpack.c.b16 %v732, %v731
        %734 = vrot.lane.b32.xlu0 %v470, 88
        %v735 = vpop.permute.xlu0 %734
        %v738 = vsel %vm525, %v733, 0
        %740 = vmatpush.bf16.msra.mxu0 0
        %741 = vmatpush.bf16.msra.mxu0 0
        %742 = vmatpush.bf16.msra.mxu0 0
        %743 = vmatpush.bf16.msra.mxu0 0
        %744 = vmatpush.bf16.msra.mxu0 0
        %745 = vmatpush.bf16.msra.mxu0 0
        %746 = vmatpush.bf16.msra.mxu0 0
        %747 = vmatpush.bf16.msra.mxu0 %v735
        %748 = vmatmul.bf16.gmra.mxu0 %v738
        %v749 = vpop.f32.mrf.mxu0
        %v750 = vadd.f32 0.0, %v749
        %v751 = vpop.f32.mrf.mxu0
        %v752 = vadd.f32 0.0, %v751
        %753 = vdwg.mxu0
        %v756 = vunpack.c.l.b16 %v723
        %v757 = vunpack.c.l.b16 %v724
        %v758 = vpack.c.b16 %v757, %v756
        %759 = vrot.lane.b32.xlu0 %v498, 88
        %v760 = vpop.permute.xlu0 %759
        %v763 = vsel %vm525, %v758, 0
        %765 = vmatpush.bf16.msra.mxu0 0
        %766 = vmatpush.bf16.msra.mxu0 0
        %767 = vmatpush.bf16.msra.mxu0 0
        %768 = vmatpush.bf16.msra.mxu0 0
        %769 = vmatpush.bf16.msra.mxu0 0
        %770 = vmatpush.bf16.msra.mxu0 0
        %771 = vmatpush.bf16.msra.mxu0 0
        %772 = vmatpush.bf16.msra.mxu0 %v760
        %773 = vmatmul.bf16.gmra.mxu0 %v763
        %v774 = vpop.f32.mrf.mxu0
        %v775 = vadd.f32 0.0, %v774
        %v776 = vpop.f32.mrf.mxu0
        %v777 = vadd.f32 0.0, %v776
        %778 = vdwg.mxu0
        %v779 = vmul.f32 %v750, %v725
        %v780 = vmul.f32 %v752, %v726
        %v781 = vmul.f32 %v775, %v727
        %v782 = vmul.f32 %v777, %v728
        %787 = vrot.lane.b32.xlu0 %v779, 8
        %v788 = vpop.permute.xlu0 %787
        %789 = vrot.lane.b32.xlu0 %v780, 8
        %v790 = vpop.permute.xlu0 %789
        %791 = vrot.lane.b32.xlu0 %v781, 8
        %v792 = vpop.permute.xlu0 %791
        %793 = vrot.lane.b32.xlu0 %v782, 8
        %v794 = vpop.permute.xlu0 %793
        %vm799 = vcmask 130112
        %800 = vst.msk [vmem:[#allocation2] sm:$0xff] %vm799, %v788
        %801 = vst.msk [vmem:[#allocation2 + $0x8] sm:$0xff] %vm799, %v790
        %802 = vst.msk [vmem:[#allocation2 + $0x10] sm:$0xff] %vm799, %v792
        %803 = vst.msk [vmem:[#allocation2 + $0x18] sm:$0xff] %vm799, %v794
        %s804 = scalar_lea.vmem %s5, 16
        %v805 = vld [vmem:[%s804] sm:$0xf]
        %v806 = vld [vmem:[%s804 + $0x4] sm:$0xf]
        %v807 = vunpack.c.l.bf16 %v805
        %v808 = vunpack.c.l.bf16 %v806
        %809 = vrot.lane.b32.xlu0 %v470, 80
        %v810 = vpop.permute.xlu0 %809
        %811 = vrot.lane.b32.xlu0 %v470, 72
        %v812 = vpop.permute.xlu0 %811
        %v814 = vsel %vm473, %v810, 0
        %v817 = vsel %vm473, %v812, 0
        %819 = vmatpush.bf16.xpose.msra.mxu0 0
        %820 = vmatpush.bf16.xpose.msra.mxu0 0
        %821 = vmatpush.bf16.xpose.msra.mxu0 0
        %822 = vmatpush.bf16.xpose.msra.mxu0 0
        %823 = vmatpush.bf16.xpose.msra.mxu0 0
        %824 = vmatpush.bf16.xpose.msra.mxu0 0
        %825 = vmatpush.bf16.xpose.msra.mxu0 0
        %826 = vmatpush.bf16.xpose.msra.mxu0 %v817
        %827 = vmatmul.bf16.gmra.mxu0 %v814
        %v828 = vpop.f32.mrf.mxu0
        %v829 = vadd.f32 %v807, %v828
        %v830 = vpop.f32.mrf.mxu0
        %v831 = vadd.f32 %v808, %v830
        %832 = vdwg.mxu0
        %833 = vrot.lane.b32.xlu0 %v498, 80
        %v834 = vpop.permute.xlu0 %833
        %835 = vrot.lane.b32.xlu0 %v498, 72
        %v836 = vpop.permute.xlu0 %835
        %v838 = vsel %vm473, %v834, 0
        %v841 = vsel %vm473, %v836, 0
        %843 = vmatpush.bf16.xpose.msra.mxu0 0
        %844 = vmatpush.bf16.xpose.msra.mxu0 0
        %845 = vmatpush.bf16.xpose.msra.mxu0 0
        %846 = vmatpush.bf16.xpose.msra.mxu0 0
        %847 = vmatpush.bf16.xpose.msra.mxu0 0
        %848 = vmatpush.bf16.xpose.msra.mxu0 0
        %849 = vmatpush.bf16.xpose.msra.mxu0 0
        %850 = vmatpush.bf16.xpose.msra.mxu0 %v841
        %851 = vmatmul.bf16.gmra.mxu0 %v838
        %v852 = vpop.f32.mrf.mxu0
        %v853 = vadd.f32 %v807, %v852
        %v854 = vpop.f32.mrf.mxu0
        %v855 = vadd.f32 %v808, %v854
        %856 = vdwg.mxu0
        %v857 = vadd.f32 %v829, %v458
        %v858 = vadd.f32 %v831, %v459
        %v859 = vadd.f32 %v853, %v460
        %v860 = vadd.f32 %v855, %v461
        %v861 = vsel %vm525, %v857, -inf
        %862 = vmax.xlane.f32.xlu0 %v861
        %v863 = vpop.xlane.xlu0 %862
        %v864 = vsel %vm525, %v858, -inf
        %865 = vmax.xlane.f32.xlu0 %v864
        %v866 = vpop.xlane.xlu0 %865
        %v867 = vsel %vm525, %v859, -inf
        %868 = vmax.xlane.f32.xlu0 %v867
        %v869 = vpop.xlane.xlu0 %868
        %v870 = vsel %vm525, %v860, -inf
        %871 = vmax.xlane.f32.xlu0 %v870
        %v872 = vpop.xlane.xlu0 %871
        %v873 = vsub.f32 %v857, %v863
        %v874 = vsub.f32 %v858, %v866
        %v875 = vsub.f32 %v859, %v869
        %v876 = vsub.f32 %v860, %v872
        %v877 = vmul.f32 %v873, 1.442695
        %v878 = vpow.pop %v877
        %v879 = vmul.f32 %v874, 1.442695
        %v880 = vpow.pop %v879
        %v881 = vmul.f32 %v875, 1.442695
        %v882 = vpow.pop %v881
        %v883 = vmul.f32 %v876, 1.442695
        %v884 = vpow.pop %v883
        %v885 = vsel %vm525, %v878, 0.0
        %886 = vadd.xlane.f32.xlu0 %v885
        %v887 = vpop.xlane.xlu0 %886
        %v888 = vsel %vm525, %v880, 0.0
        %889 = vadd.xlane.f32.xlu0 %v888
        %v890 = vpop.xlane.xlu0 %889
        %v891 = vsel %vm525, %v882, 0.0
        %892 = vadd.xlane.f32.xlu0 %v891
        %v893 = vpop.xlane.xlu0 %892
        %v894 = vsel %vm525, %v884, 0.0
        %895 = vadd.xlane.f32.xlu0 %v894
        %v896 = vpop.xlane.xlu0 %895
        %v897 = vpack.c.bf16 %v878, %v878
        %v898 = vpack.c.bf16 %v880, %v880
        %v899 = vpack.c.bf16 %v882, %v882
        %v900 = vpack.c.bf16 %v884, %v884
        %v901 = vrcp.pop %v887
        %v902 = vrcp.pop %v890
        %v903 = vrcp.pop %v893
        %v904 = vrcp.pop %v896
        %v907 = vunpack.c.l.b16 %v897
        %v908 = vunpack.c.l.b16 %v898
        %v909 = vpack.c.b16 %v908, %v907
        %910 = vrot.lane.b32.xlu0 %v470, 64
        %v911 = vpop.permute.xlu0 %910
        %v914 = vsel %vm525, %v909, 0
        %916 = vmatpush.bf16.msra.mxu0 0
        %917 = vmatpush.bf16.msra.mxu0 0
        %918 = vmatpush.bf16.msra.mxu0 0
        %919 = vmatpush.bf16.msra.mxu0 0
        %920 = vmatpush.bf16.msra.mxu0 0
        %921 = vmatpush.bf16.msra.mxu0 0
        %922 = vmatpush.bf16.msra.mxu0 0
        %923 = vmatpush.bf16.msra.mxu0 %v911
        %924 = vmatmul.bf16.gmra.mxu0 %v914
        %v925 = vpop.f32.mrf.mxu0
        %v926 = vadd.f32 0.0, %v925
        %v927 = vpop.f32.mrf.mxu0
        %v928 = vadd.f32 0.0, %v927
        %929 = vdwg.mxu0
        %v932 = vunpack.c.l.b16 %v899
        %v933 = vunpack.c.l.b16 %v900
        %v934 = vpack.c.b16 %v933, %v932
        %935 = vrot.lane.b32.xlu0 %v498, 64
        %v936 = vpop.permute.xlu0 %935
        %v939 = vsel %vm525, %v934, 0
        %941 = vmatpush.bf16.msra.mxu0 0
        %942 = vmatpush.bf16.msra.mxu0 0
        %943 = vmatpush.bf16.msra.mxu0 0
        %944 = vmatpush.bf16.msra.mxu0 0
        %945 = vmatpush.bf16.msra.mxu0 0
        %946 = vmatpush.bf16.msra.mxu0 0
        %947 = vmatpush.bf16.msra.mxu0 0
        %948 = vmatpush.bf16.msra.mxu0 %v936
        %949 = vmatmul.bf16.gmra.mxu0 %v939
        %v950 = vpop.f32.mrf.mxu0
        %v951 = vadd.f32 0.0, %v950
        %v952 = vpop.f32.mrf.mxu0
        %v953 = vadd.f32 0.0, %v952
        %954 = vdwg.mxu0
        %v955 = vmul.f32 %v926, %v901
        %v956 = vmul.f32 %v928, %v902
        %v957 = vmul.f32 %v951, %v903
        %v958 = vmul.f32 %v953, %v904
        %963 = vrot.lane.b32.xlu0 %v955, 16
        %v964 = vpop.permute.xlu0 %963
        %965 = vrot.lane.b32.xlu0 %v956, 16
        %v966 = vpop.permute.xlu0 %965
        %967 = vrot.lane.b32.xlu0 %v957, 16
        %v968 = vpop.permute.xlu0 %967
        %969 = vrot.lane.b32.xlu0 %v958, 16
        %v970 = vpop.permute.xlu0 %969
        %vm975 = vcmask 195712
        %976 = vst.msk [vmem:[#allocation2] sm:$0xff] %vm975, %v964
        %977 = vst.msk [vmem:[#allocation2 + $0x8] sm:$0xff] %vm975, %v966
        %978 = vst.msk [vmem:[#allocation2 + $0x10] sm:$0xff] %vm975, %v968
        %979 = vst.msk [vmem:[#allocation2 + $0x18] sm:$0xff] %vm975, %v970
        %s980 = scalar_lea.vmem %s5, 24
        %v981 = vld [vmem:[%s980] sm:$0xf]
        %v982 = vld [vmem:[%s980 + $0x4] sm:$0xf]
        %v983 = vunpack.c.l.bf16 %v981
        %v984 = vunpack.c.l.bf16 %v982
        %985 = vrot.lane.b32.xlu0 %v470, 56
        %v986 = vpop.permute.xlu0 %985
        %987 = vrot.lane.b32.xlu0 %v470, 48
        %v988 = vpop.permute.xlu0 %987
        %v990 = vsel %vm473, %v986, 0
        %v993 = vsel %vm473, %v988, 0
        %995 = vmatpush.bf16.xpose.msra.mxu0 0
        %996 = vmatpush.bf16.xpose.msra.mxu0 0
        %997 = vmatpush.bf16.xpose.msra.mxu0 0
        %998 = vmatpush.bf16.xpose.msra.mxu0 0
        %999 = vmatpush.bf16.xpose.msra.mxu0 0
        %1000 = vmatpush.bf16.xpose.msra.mxu0 0
        %1001 = vmatpush.bf16.xpose.msra.mxu0 0
        %1002 = vmatpush.bf16.xpose.msra.mxu0 %v993
        %1003 = vmatmul.bf16.gmra.mxu0 %v990
        %v1004 = vpop.f32.mrf.mxu0
        %v1005 = vadd.f32 %v983, %v1004
        %v1006 = vpop.f32.mrf.mxu0
        %v1007 = vadd.f32 %v984, %v1006
        %1008 = vdwg.mxu0
        %1009 = vrot.lane.b32.xlu0 %v498, 56
        %v1010 = vpop.permute.xlu0 %1009
        %1011 = vrot.lane.b32.xlu0 %v498, 48
        %v1012 = vpop.permute.xlu0 %1011
        %v1014 = vsel %vm473, %v1010, 0
        %v1017 = vsel %vm473, %v1012, 0
        %1019 = vmatpush.bf16.xpose.msra.mxu0 0
        %1020 = vmatpush.bf16.xpose.msra.mxu0 0
        %1021 = vmatpush.bf16.xpose.msra.mxu0 0
        %1022 = vmatpush.bf16.xpose.msra.mxu0 0
        %1023 = vmatpush.bf16.xpose.msra.mxu0 0
        %1024 = vmatpush.bf16.xpose.msra.mxu0 0
        %1025 = vmatpush.bf16.xpose.msra.mxu0 0
        %1026 = vmatpush.bf16.xpose.msra.mxu0 %v1017
        %1027 = vmatmul.bf16.gmra.mxu0 %v1014
        %v1028 = vpop.f32.mrf.mxu0
        %v1029 = vadd.f32 %v983, %v1028
        %v1030 = vpop.f32.mrf.mxu0
        %v1031 = vadd.f32 %v984, %v1030
        %1032 = vdwg.mxu0
        %v1033 = vadd.f32 %v1005, %v458
        %v1034 = vadd.f32 %v1007, %v459
        %v1035 = vadd.f32 %v1029, %v460
        %v1036 = vadd.f32 %v1031, %v461
        %v1037 = vsel %vm525, %v1033, -inf
        %1038 = vmax.xlane.f32.xlu0 %v1037
        %v1039 = vpop.xlane.xlu0 %1038
        %v1040 = vsel %vm525, %v1034, -inf
        %1041 = vmax.xlane.f32.xlu0 %v1040
        %v1042 = vpop.xlane.xlu0 %1041
        %v1043 = vsel %vm525, %v1035, -inf
        %1044 = vmax.xlane.f32.xlu0 %v1043
        %v1045 = vpop.xlane.xlu0 %1044
        %v1046 = vsel %vm525, %v1036, -inf
        %1047 = vmax.xlane.f32.xlu0 %v1046
        %v1048 = vpop.xlane.xlu0 %1047
        %v1049 = vsub.f32 %v1033, %v1039
        %v1050 = vsub.f32 %v1034, %v1042
        %v1051 = vsub.f32 %v1035, %v1045
        %v1052 = vsub.f32 %v1036, %v1048
        %v1053 = vmul.f32 %v1049, 1.442695
        %v1054 = vpow.pop %v1053
        %v1055 = vmul.f32 %v1050, 1.442695
        %v1056 = vpow.pop %v1055
        %v1057 = vmul.f32 %v1051, 1.442695
        %v1058 = vpow.pop %v1057
        %v1059 = vmul.f32 %v1052, 1.442695
        %v1060 = vpow.pop %v1059
        %v1061 = vsel %vm525, %v1054, 0.0
        %1062 = vadd.xlane.f32.xlu0 %v1061
        %v1063 = vpop.xlane.xlu0 %1062
        %v1064 = vsel %vm525, %v1056, 0.0
        %1065 = vadd.xlane.f32.xlu0 %v1064
        %v1066 = vpop.xlane.xlu0 %1065
        %v1067 = vsel %vm525, %v1058, 0.0
        %1068 = vadd.xlane.f32.xlu0 %v1067
        %v1069 = vpop.xlane.xlu0 %1068
        %v1070 = vsel %vm525, %v1060, 0.0
        %1071 = vadd.xlane.f32.xlu0 %v1070
        %v1072 = vpop.xlane.xlu0 %1071
        %v1073 = vpack.c.bf16 %v1054, %v1054
        %v1074 = vpack.c.bf16 %v1056, %v1056
        %v1075 = vpack.c.bf16 %v1058, %v1058
        %v1076 = vpack.c.bf16 %v1060, %v1060
        %v1077 = vrcp.pop %v1063
        %v1078 = vrcp.pop %v1066
        %v1079 = vrcp.pop %v1069
        %v1080 = vrcp.pop %v1072
        %v1083 = vunpack.c.l.b16 %v1073
        %v1084 = vunpack.c.l.b16 %v1074
        %v1085 = vpack.c.b16 %v1084, %v1083
        %1086 = vrot.lane.b32.xlu0 %v470, 40
        %v1087 = vpop.permute.xlu0 %1086
        %v1090 = vsel %vm525, %v1085, 0
        %1092 = vmatpush.bf16.msra.mxu0 0
        %1093 = vmatpush.bf16.msra.mxu0 0
        %1094 = vmatpush.bf16.msra.mxu0 0
        %1095 = vmatpush.bf16.msra.mxu0 0
        %1096 = vmatpush.bf16.msra.mxu0 0
        %1097 = vmatpush.bf16.msra.mxu0 0
        %1098 = vmatpush.bf16.msra.mxu0 0
        %1099 = vmatpush.bf16.msra.mxu0 %v1087
        %1100 = vmatmul.bf16.gmra.mxu0 %v1090
        %v1101 = vpop.f32.mrf.mxu0
        %v1102 = vadd.f32 0.0, %v1101
        %v1103 = vpop.f32.mrf.mxu0
        %v1104 = vadd.f32 0.0, %v1103
        %1105 = vdwg.mxu0
        %v1108 = vunpack.c.l.b16 %v1075
        %v1109 = vunpack.c.l.b16 %v1076
        %v1110 = vpack.c.b16 %v1109, %v1108
        %1111 = vrot.lane.b32.xlu0 %v498, 40
        %v1112 = vpop.permute.xlu0 %1111
        %v1115 = vsel %vm525, %v1110, 0
        %1117 = vmatpush.bf16.msra.mxu0 0
        %1118 = vmatpush.bf16.msra.mxu0 0
        %1119 = vmatpush.bf16.msra.mxu0 0
        %1120 = vmatpush.bf16.msra.mxu0 0
        %1121 = vmatpush.bf16.msra.mxu0 0
        %1122 = vmatpush.bf16.msra.mxu0 0
        %1123 = vmatpush.bf16.msra.mxu0 0
        %1124 = vmatpush.bf16.msra.mxu0 %v1112
        %1125 = vmatmul.bf16.gmra.mxu0 %v1115
        %v1126 = vpop.f32.mrf.mxu0
        %v1127 = vadd.f32 0.0, %v1126
        %v1128 = vpop.f32.mrf.mxu0
        %v1129 = vadd.f32 0.0, %v1128
        %1130 = vdwg.mxu0
        %v1131 = vmul.f32 %v1102, %v1077
        %v1132 = vmul.f32 %v1104, %v1078
        %v1133 = vmul.f32 %v1127, %v1079
        %v1134 = vmul.f32 %v1129, %v1080
        %1139 = vrot.lane.b32.xlu0 %v1131, 24
        %v1140 = vpop.permute.xlu0 %1139
        %1141 = vrot.lane.b32.xlu0 %v1132, 24
        %v1142 = vpop.permute.xlu0 %1141
        %1143 = vrot.lane.b32.xlu0 %v1133, 24
        %v1144 = vpop.permute.xlu0 %1143
        %1145 = vrot.lane.b32.xlu0 %v1134, 24
        %v1146 = vpop.permute.xlu0 %1145
        %vm1151 = vcmask 261312
        %1152 = vst.msk [vmem:[#allocation2] sm:$0xff] %vm1151, %v1140
        %1153 = vst.msk [vmem:[#allocation2 + $0x8] sm:$0xff] %vm1151, %v1142
        %1154 = vst.msk [vmem:[#allocation2 + $0x10] sm:$0xff] %vm1151, %v1144
        %1155 = vst.msk [vmem:[#allocation2 + $0x18] sm:$0xff] %vm1151, %v1146
        %v1156 = vld [vmem:[#allocation2] sm:$0xff]
        %v1157 = vld [vmem:[#allocation2 + $0x8] sm:$0xff]
        %v1158 = vld [vmem:[#allocation2 + $0x10] sm:$0xff]
        %v1159 = vld [vmem:[#allocation2 + $0x18] sm:$0xff]
        %v1160 = vpack.c.bf16 %v1157, %v1156
        %v1161 = vpack.c.bf16 %v1159, %v1158
        %v1162 = vld [vmem:[%s3] sm:$0xf]
        %v1163 = vld [vmem:[%s3 + $0x4] sm:$0xf]
        %v1164 = vld [vmem:[%s3 + $0x8] sm:$0xf]
        %v1165 = vld [vmem:[%s3 + $0xc] sm:$0xf]
        %v1166 = vld [vmem:[%s4] sm:$0x1]
        %v1168 = vperm.slane %v1166, 0
        %v1174 = vunpack.c.l.b16 %v1162
        %v1175 = vunpack.c.l.b16 %v1163
        %v1176 = vunpack.c.l.b16 %v1164
        %v1177 = vunpack.c.l.b16 %v1165
        %v1178 = vpack.c.b16 %v1175, %v1174
        %v1179 = vpack.c.b16 %v1177, %v1176
        %v1183 = vsel %vm424, %v1160, 0
        %v1186 = vsel %vm424, %v1161, 0
        %1188 = vmatpush.bf16.msra.mxu0 0
        %1189 = vmatpush.bf16.msra.mxu0 0
        %1190 = vmatpush.bf16.msra.mxu0 0
        %1191 = vmatpush.bf16.msra.mxu0 0
        %1192 = vmatpush.bf16.msra.mxu0 0
        %1193 = vmatpush.bf16.msra.mxu0 0
        %1194 = vmatpush.bf16.msra.mxu0 %v1179
        %1195 = vmatpush.bf16.msra.mxu0 %v1178
        %1196 = vmatmul.bf16.gmra.mxu0 %v1183
        %v1197 = vpop.f32.mrf.mxu0
        %v1198 = vadd.f32 %v1168, %v1197
        %v1199 = vpop.f32.mrf.mxu0
        %v1200 = vadd.f32 %v1168, %v1199
        %1201 = vmatmul.bf16.gmra.mxu0 %v1186
        %v1202 = vpop.f32.mrf.mxu0
        %v1203 = vadd.f32 %v1168, %v1202
        %v1204 = vpop.f32.mrf.mxu0
        %v1205 = vadd.f32 %v1168, %v1204
        %1206 = vdwg.mxu0
        %1207 = vst.msk [vmem:[%s350] sm:$0xff] %vm424, %v1198
        %1208 = vst.msk [vmem:[%s350 + $0x8] sm:$0xff] %vm424, %v1200
        %1209 = vst.msk [vmem:[%s350 + $0x10] sm:$0xff] %vm424, %v1203
        %1210 = vst.msk [vmem:[%s350 + $0x18] sm:$0xff] %vm424, %v1205
        %s1211 = sand.u32 %s210, 1
        %s1212 = scalar_lea.sflag [#allocation4], %s1211
        %s1213 = sand.u32 %s210, 1
        %s1214 = smul.addr %s1213, 32
        %s1215 = scalar_lea.vmem [#allocation3], %s1214
        // Predicated region
        $region49: #{window_attention_forward.1} parent=47 // pred_check
          %p1216 = pneg %p220
        $region50: #{window_attention_forward.1} parent=47 // pred_check_branch
          %1218 = sbr.rel (%p1216) target = $region52
        $region51: #{window_attention_forward.1} parent=47 // pred_region
          %s1219 = smul.u32 4, %s21
          %1221 = vsyncadd %s1212, 0
          %s1222 = smul.addr %s1219, 8
          %s1223 = scalar_lea.hbm %s7, %s1222
          %s1224 = sshll.u32 %s1215, 4
          %s1225 = int_to_ptr.vmem [resolvable:$true] %s1224
          %s1226 = sshll.u32 %s1223, 4
          %s1227 = int_to_ptr.hbm [resolvable:$true] %s1226
          %1232 = dma.vmem_to_hbm [thread:$0]  %s1225, 512, %s1227, %s1212, 128, 128, 8
        $region52: #{window_attention_forward.1} parent=47 // pred_fallthru
          _
      $region48: #{window_attention_forward.1} parent=5 // pred_fallthru
        _
      %p1233 = scmp.le.s32.totalorder 2, %s16
      // Predicated region
      $region53: #{window_attention_forward.1} parent=5 // pred_check
        %p1234 = pneg %p1233
      $region54: #{window_attention_forward.1} parent=5 // pred_check_branch
        %1236 = sbr.rel (%p1234) target = $region56
      $region55: #{window_attention_forward.1} parent=5 // pred_region
        %s1237 = ssub.s32 %s16, 2
        // Predicated region
        $region57: #{window_attention_forward.1} parent=55 // pred_check
          %p1238 = pneg %p226
        $region58: #{window_attention_forward.1} parent=55 // pred_check_branch
          %1240 = sbr.rel (%p1238) target = $region60
        $region59: #{window_attention_forward.1} parent=55 // pred_region
          %s1241 = sand.u32 %s211, 1
          %s1242 = scalar_lea.sflag [#allocation4], %s1241
          %s1243 = sand.u32 %s211, 1
          %s1244 = smul.addr %s1243, 32
          %s1245 = scalar_lea.vmem [#allocation3], %s1244
          %1247 = dma.done %s1242, 512
        $region60: #{window_attention_forward.1} parent=55 // pred_fallthru
          _
      $region56: #{window_attention_forward.1} parent=5 // pred_fallthru
        _
    $region6: #{window_attention_forward.1} parent=1 // loop_footer
      %s20 = sadd.s32 1, %s16
    $region7: #{window_attention_forward.1} parent=1 // loop_footer_branch
      %15 = sbr.rel target = $region3
    $region8: #{window_attention_forward.1} parent=1 // loop_exit
      _
    %1248 = vsyncpa [#allocation4], 1
    %s1249 = scalar_lea.sflag [#allocation4], 1
    %1250 = vsyncpa %s1249, 1

</llo_original>
